<compile_context>
chip_gen: v7x
topology: tpu7x:2x2x1
jax: 0.10.0
libtpu: 0.0.40
codegen_flags: <defaults>
</compile_context>

<pallas_src>
import math
import jax
import jax.numpy as jnp
from jax.experimental import pallas as pl
from jax.experimental.pallas import tpu as pltpu  # noqa: F401  (TPU backend module)

VOCAB = 64
D_MODEL = 32
N_HEADS = 4
HEAD_DIM = D_MODEL // N_HEADS
D_HID = 64
N_LAYERS = 2
LN_EPS = 1e-5
LANE = 128          # lane-dense padded logits width
NEG_INF = -1e9

# packed per-layer weight-slab row offsets (all multiples of 8 -> cheap sub-views)
_R_QKV = 0
_R_WO = D_MODEL
_R_W1 = 2 * D_MODEL
_R_W2 = 3 * D_MODEL
_R_VEC = 3 * D_MODEL + D_HID
_SLAB_ROWS = _R_VEC + 8
_SLAB_W = 3 * D_MODEL        # 96


def _mm(a, b):
    """a @ b on the MXU, f32 operands & f32 accumulation (no bf16 casts)."""
    return jax.lax.dot_general(a, b, (((1,), (0,)), ((), ())),
                               preferred_element_type=jnp.float32)


def _mm_t(a, b):
    """a @ b.T on the MXU (contract last dims), f32."""
    return jax.lax.dot_general(a, b, (((1,), (1,)), ((), ())),
                               preferred_element_type=jnp.float32)


def _layer_norm(x, w, b):
    mean = jnp.mean(x, axis=-1, keepdims=True)
    var = jnp.mean(jnp.square(x - mean), axis=-1, keepdims=True)
    return (x - mean) * jax.lax.rsqrt(var + LN_EPS) * w + b


def _softmax_rows(s):
    s = s - jnp.max(s, axis=-1, keepdims=True)
    p = jnp.exp(s)
    denom = jnp.sum(p, axis=-1, keepdims=True)
    return p * pl.reciprocal(denom, approx=True)   # EUP slot, frees the VPU divide


def _transformer_lm_kernel(ids_ref, attn_mask_ref, emb_pe_ref, consts_ref,
                           wts_ref, dec_ref, out_ref):
    BS = ids_ref.shape[0]             # batch * seq rows, in (seq, batch) order
    HBS = attn_mask_ref.shape[0]      # heads * batch * seq
    K_EMB = emb_pe_ref.shape[0]       # VOCAB + BS

    # ---- constant matrices (loaded once, reused by every layer) ----
    consts = consts_ref[...]
    rep_mat = consts[0:HBS, 0:BS]                       # [H*BS, BS] row replication
    head_mask = consts[HBS:2 * HBS, 0:D_MODEL]          # [H*BS, D]  per-head column mask
    sum_mat = consts[2 * HBS:2 * HBS + BS, 0:HBS]       # [BS, H*BS] head-block summation
    attn_mask = attn_mask_ref[...]                      # [H*BS, BS] additive mask

    # ---- embedding*sqrt(D) + positional encoding as ONE augmented one-hot matmul ----
    ids = ids_ref[...]                                              # [BS, 1] int32
    col = jax.lax.broadcasted_iota(jnp.int32, (BS, K_EMB), 1)
    row = jax.lax.broadcasted_iota(jnp.int32, (BS, K_EMB), 0)
    one_hot = jnp.logical_or(col == ids, col == VOCAB + row).astype(jnp.float32)
    x = _mm(one_hot, emb_pe_ref[...])                               # [BS, D]
    # position_encoder dropout: identity (eval mode)

    for l in range(N_LAYERS):                                       # static unroll
        wts = wts_ref[l]                                            # [168, 96] slab
        wqkv = wts[_R_QKV:_R_QKV + D_MODEL, :]                      # [D, 3D] (Q pre-scaled)
        wo = wts[_R_WO:_R_WO + D_MODEL, 0:D_MODEL]                  # [D, D]
        w1 = wts[_R_W1:_R_W1 + D_MODEL, 0:D_HID]                    # [D, DH]
        w2 = wts[_R_W2:_R_W2 + D_HID, 0:D_MODEL]                    # [DH, D]
        vec = wts[_R_VEC:_R_VEC + 8, :]                             # [8, 3D] packed vectors
        b_qkv = vec[0:1, :]
        bo = vec[1:2, 0:D_MODEL]
        b1 = vec[2:3, 0:D_HID]
        b2 = vec[3:4, 0:D_MODEL]
        ln1w, ln1b = vec[4:5, 0:D_MODEL], vec[5:6, 0:D_MODEL]
        ln2w, ln2b = vec[6:7, 0:D_MODEL], vec[7:8, 0:D_MODEL]

        # fused Q/K/V projection for all batches at once (scale folded into wqkv)
        qkv = _mm(x, wqkv) + b_qkv                                  # [BS, 3D]
        q = qkv[:, 0:D_MODEL]
        k = qkv[:, D_MODEL:2 * D_MODEL]
        v = qkv[:, 2 * D_MODEL:3 * D_MODEL]

        # all heads AND all batches in one scores / softmax / context pass
        q_rep = _mm(rep_mat, q) * head_mask                         # [H*BS, D]
        scores = _mm_t(q_rep, k) + attn_mask                        # [H*BS, BS]
        p = _softmax_rows(scores)
        ctx_rep = _mm(p, v) * head_mask                             # [H*BS, D]
        ctx = _mm(sum_mat, ctx_rep)                                 # [BS, D] heads merged

        attn = _mm(ctx, wo) + bo                                    # output projection
        x1 = _layer_norm(x + attn, ln1w, ln1b)                      # post-norm (dropout1 = id)
        h1 = jnp.maximum(_mm(x1, w1) + b1, 0.0)                     # ReLU FFN
        ff = _mm(h1, w2) + b2
        x = _layer_norm(x1 + ff, ln2w, ln2b)                        # (dropout2 = id)

    # lane-dense decoder writeback: [BS, 128] (columns >= VOCAB are zero padding)
    dec = dec_ref[...]
    out_ref[...] = _mm(x, dec[0:D_MODEL, :]) + dec[D_MODEL:D_MODEL + 1, :]


def positional_encoding(max_len, d_model):
    pos = jnp.arange(max_len, dtype=jnp.float32)[:, None]
    div = jnp.exp(jnp.arange(0, d_model, 2, dtype=jnp.float32)
                  * (-math.log(10000.0) / d_model))
    pe = jnp.zeros((max_len, d_model), jnp.float32)
    pe = pe.at[:, 0::2].set(jnp.sin(pos * div))
    pe = pe.at[:, 1::2].set(jnp.cos(pos * div))
    return pe


def init_params(key, seq_len, batch):
    """Model parameters plus shape-specialized packed constant slabs."""
    assert VOCAB <= LANE
    ks = jax.random.split(key, 2 + N_LAYERS)

    def unif(k, shape, bound):
        return jax.random.uniform(k, shape, jnp.float32, -bound, bound)

    def pad_cols(m):
        return jnp.pad(m, ((0, 0), (0, _SLAB_W - m.shape[1])))

    def pad_vec(v):
        return jnp.pad(v.astype(jnp.float32), (0, _SLAB_W - v.shape[0]))[None, :]

    scale = 1.0 / math.sqrt(HEAD_DIM)
    xavier = math.sqrt(6.0 / (D_MODEL + 3 * D_MODEL))     # MHA in_proj xavier_uniform
    slabs = []
    for l in range(N_LAYERS):
        lk = jax.random.split(ks[2 + l], 8)
        wq = unif(lk[0], (D_MODEL, D_MODEL), xavier)
        wk = unif(lk[1], (D_MODEL, D_MODEL), xavier)
        wv = unif(lk[2], (D_MODEL, D_MODEL), xavier)
        wo = unif(lk[3], (D_MODEL, D_MODEL), 1.0 / math.sqrt(D_MODEL))
        w1 = unif(lk[4], (D_MODEL, D_HID), 1.0 / math.sqrt(D_MODEL))
        w2 = unif(lk[5], (D_HID, D_MODEL), 1.0 / math.sqrt(D_HID))
        b1 = unif(lk[6], (D_HID,), 1.0 / math.sqrt(D_MODEL))
        b2 = unif(lk[7], (D_MODEL,), 1.0 / math.sqrt(D_HID))
        # weights pre-transposed to [in, out]; 1/sqrt(head_dim) folded into Q columns
        wqkv = jnp.concatenate([wq * scale, wk, wv], axis=1)          # [D, 3D]
        vec = jnp.concatenate([
            jnp.zeros((1, _SLAB_W), jnp.float32),    # in_proj bias (0, scale irrelevant)
            pad_vec(jnp.zeros((D_MODEL,))),          # out_proj bias = 0
            pad_vec(b1), pad_vec(b2),                # FFN biases (PyTorch-style uniform)
            pad_vec(jnp.ones((D_MODEL,))), pad_vec(jnp.zeros((D_MODEL,))),   # ln1 w,b
            pad_vec(jnp.ones((D_MODEL,))), pad_vec(jnp.zeros((D_MODEL,))),   # ln2 w,b
        ], axis=0)                                                     # [8, 3D]
        slabs.append(jnp.concatenate(
            [wqkv, pad_cols(wo), pad_cols(w1), pad_cols(w2), vec], axis=0))  # [168, 96]

    # packed attention constants (replication | head mask | summation), width H*B*S
    BS = batch * seq_len
    HBS = N_HEADS * BS
    eye = jnp.eye(BS, dtype=jnp.float32)
    rep_mat = jnp.tile(eye, (N_HEADS, 1))                              # [H*BS, BS]
    sum_mat = jnp.tile(eye, (1, N_HEADS))                              # [BS, H*BS]
    head_mask = (jnp.repeat(jnp.arange(N_HEADS), BS)[:, None]
                 == (jnp.arange(D_MODEL) // HEAD_DIM)[None, :]).astype(jnp.float32)
    attn_consts = jnp.concatenate([
        jnp.pad(rep_mat, ((0, 0), (0, HBS - BS))),
        jnp.pad(head_mask, ((0, 0), (0, HBS - D_MODEL))),
        sum_mat,
    ], axis=0)                                                         # [2*H*BS+BS, H*BS]

    # lane-dense decoder slab: rows 0:D weight (padded to 128 lanes), row D bias (zero)
    dec_w = unif(ks[1], (D_MODEL, VOCAB), 0.1)                         # uniform(-0.1, 0.1)
    dec = jnp.concatenate([
        jnp.pad(dec_w, ((0, 0), (0, LANE - VOCAB))),
        jnp.zeros((1, LANE), jnp.float32),
    ], axis=0)                                                         # [D+1, 128]

    return {
        "embed_scaled": unif(ks[0], (VOCAB, D_MODEL), 0.1) * math.sqrt(D_MODEL),
        "pe": positional_encoding(5000, D_MODEL),
        "wts": jnp.stack(slabs),                                       # [L, 168, 96]
        "attn_consts": attn_consts,
        "dec": dec,
    }


def transformer_lm_forward(src, src_mask, params):
    """src: [S, B] int32 token ids; src_mask: [S, S] additive float mask.
    Returns logits of shape [S, B, VOCAB] (matches the PyTorch module)."""
    S, B = src.shape
    assert params["attn_consts"].shape[1] == N_HEADS * S * B

    # activation rows stay in (seq, batch) order end-to-end -> no transposes anywhere
    ids = src.reshape(S * B, 1).astype(jnp.int32)
    # embedding(*sqrt(D)) rows + positional-encoding rows packed into one matmul operand
    emb_pe = jnp.concatenate(
        [params["embed_scaled"], jnp.repeat(params["pe"][:S], B, axis=0)], axis=0)
    # additive mask over (head, batch*seq) rows: src_mask within a batch, -1e9 across
    # batches (those entries softmax to 0 -> identical to per-batch attention)
    bd = jnp.where(jnp.eye(B, dtype=bool)[None, :, None, :],
                   src_mask.astype(jnp.float32)[:, None, :, None], NEG_INF)
    attn_mask = jnp.tile(bd.reshape(S * B, S * B), (N_HEADS, 1))

    out = pl.pallas_call(
        _transformer_lm_kernel,
        out_shape=jax.ShapeDtypeStruct((S * B, LANE), jnp.float32),
    )(ids, attn_mask, emb_pe, params["attn_consts"], params["wts"], params["dec"])

    # rows are already (seq, batch); only the lane-padding slice remains
    return out.reshape(S, B, LANE)[:, :, :VOCAB]


if __name__ == "__main__":
    key = jax.random.PRNGKey(0)
    pkey, dkey = jax.random.split(key)

    S, B = 8, 2
    params = init_params(pkey, seq_len=S, batch=B)
    src = jax.random.randint(dkey, (S, B), 0, VOCAB, dtype=jnp.int32)
    causal = jnp.tril(jnp.ones((S, S), dtype=jnp.bool_))
    src_mask = jnp.where(causal, 0.0, -1e9).astype(jnp.float32)

    fwd = jax.jit(transformer_lm_forward)
    out = fwd(src, src_mask, params)
    jax.block_until_ready(out)
    assert out.shape == (S, B, VOCAB), out.shape
    assert bool(jnp.all(jnp.isfinite(out)))
    print("KERNEL_OK")
</pallas_src>

<mosaic_0001>
module attributes {stable_mosaic.version = 11 : i64} {
  func.func @_transformer_lm_kernel(%arg0: memref<16x1xi32, #tpu.memory_space<vmem>>, %arg1: memref<64x16xf32, #tpu.memory_space<vmem>>, %arg2: memref<80x32xf32, #tpu.memory_space<vmem>>, %arg3: memref<144x64xf32, #tpu.memory_space<vmem>>, %arg4: memref<2x168x96xf32, #tpu.memory_space<vmem>>, %arg5: memref<33x128xf32, #tpu.memory_space<vmem>>, %arg6: memref<16x128xf32, #tpu.memory_space<vmem>>) attributes {dimension_semantics = [], scalar_prefetch = 0 : i64, scratch_operands = 0 : i64, tpu.core_type = #tpu.core_type<tc>} {
    %c0 = arith.constant 0 : index
    %c0_0 = arith.constant 0 : index
    %0 = vector.load %arg3[%c0, %c0_0] : memref<144x64xf32, #tpu.memory_space<vmem>>, vector<144x64xf32>
    %1 = vector.extract_strided_slice %0 {offsets = [0, 0], sizes = [64, 16], strides = [1, 1]} : vector<144x64xf32> to vector<64x16xf32>
    %2 = vector.extract_strided_slice %0 {offsets = [64, 0], sizes = [64, 32], strides = [1, 1]} : vector<144x64xf32> to vector<64x32xf32>
    %3 = vector.extract_strided_slice %0 {offsets = [128, 0], sizes = [16, 64], strides = [1, 1]} : vector<144x64xf32> to vector<16x64xf32>
    %c0_1 = arith.constant 0 : index
    %c0_2 = arith.constant 0 : index
    %4 = vector.load %arg1[%c0_1, %c0_2] : memref<64x16xf32, #tpu.memory_space<vmem>>, vector<64x16xf32>
    %c0_3 = arith.constant 0 : index
    %c0_4 = arith.constant 0 : index
    %5 = vector.load %arg0[%c0_3, %c0_4] : memref<16x1xi32, #tpu.memory_space<vmem>>, vector<16x1xi32>
    %6 = tpu.iota {dimensions = array<i32: 1>} : vector<16x80xi32>
    %7 = tpu.iota {dimensions = array<i32: 0>} : vector<16x80xi32>
    %8 = vector.broadcast %5 : vector<16x1xi32> to vector<16x80xi32>
    %9 = arith.cmpi eq, %6, %8 : vector<16x80xi32>
    %c64_i32 = arith.constant 64 : i32
    %10 = vector.broadcast %c64_i32 : i32 to vector<16x80xi32>
    %11 = arith.addi %10, %7 : vector<16x80xi32>
    %12 = arith.cmpi eq, %6, %11 : vector<16x80xi32>
    %13 = arith.ori %9, %12 : vector<16x80xi1>
    %14 = arith.extui %13 : vector<16x80xi1> to vector<16x80xi32>
    %15 = arith.sitofp %14 : vector<16x80xi32> to vector<16x80xf32>
    %c0_5 = arith.constant 0 : index
    %c0_6 = arith.constant 0 : index
    %16 = vector.load %arg2[%c0_5, %c0_6] : memref<80x32xf32, #tpu.memory_space<vmem>>, vector<80x32xf32>
    %cst = arith.constant dense<0.000000e+00> : vector<16x32xf32>
    %17 = tpu.matmul %15, %16, %cst {dimension_numbers = #tpu.dot_dimension_numbers<[1], [0], [0], [1], [0, 0, 1, 1], [], []>} : vector<16x80xf32>, vector<80x32xf32>, vector<16x32xf32> -> vector<16x32xf32>
    %c0_7 = arith.constant 0 : index
    %c0_8 = arith.constant 0 : index
    %c0_9 = arith.constant 0 : index
    %18 = vector.load %arg4[%c0_7, %c0_8, %c0_9] : memref<2x168x96xf32, #tpu.memory_space<vmem>>, vector<1x168x96xf32>
    %19 = vector.shape_cast %18 : vector<1x168x96xf32> to vector<168x96xf32>
    %20 = vector.extract_strided_slice %19 {offsets = [0, 0], sizes = [32, 96], strides = [1, 1]} : vector<168x96xf32> to vector<32x96xf32>
    %21 = vector.extract_strided_slice %19 {offsets = [32, 0], sizes = [32, 32], strides = [1, 1]} : vector<168x96xf32> to vector<32x32xf32>
    %22 = vector.extract_strided_slice %19 {offsets = [64, 0], sizes = [32, 64], strides = [1, 1]} : vector<168x96xf32> to vector<32x64xf32>
    %23 = vector.extract_strided_slice %19 {offsets = [96, 0], sizes = [64, 32], strides = [1, 1]} : vector<168x96xf32> to vector<64x32xf32>
    %24 = vector.extract_strided_slice %19 {offsets = [160, 0], sizes = [8, 96], strides = [1, 1]} : vector<168x96xf32> to vector<8x96xf32>
    %25 = vector.extract_strided_slice %24 {offsets = [0, 0], sizes = [1, 96], strides = [1, 1]} : vector<8x96xf32> to vector<1x96xf32>
    %26 = vector.extract_strided_slice %24 {offsets = [1, 0], sizes = [1, 32], strides = [1, 1]} : vector<8x96xf32> to vector<1x32xf32>
    %27 = vector.extract_strided_slice %24 {offsets = [2, 0], sizes = [1, 64], strides = [1, 1]} : vector<8x96xf32> to vector<1x64xf32>
    %28 = vector.extract_strided_slice %24 {offsets = [3, 0], sizes = [1, 32], strides = [1, 1]} : vector<8x96xf32> to vector<1x32xf32>
    %29 = vector.extract_strided_slice %24 {offsets = [4, 0], sizes = [1, 32], strides = [1, 1]} : vector<8x96xf32> to vector<1x32xf32>
    %30 = vector.extract_strided_slice %24 {offsets = [5, 0], sizes = [1, 32], strides = [1, 1]} : vector<8x96xf32> to vector<1x32xf32>
    %31 = vector.extract_strided_slice %24 {offsets = [6, 0], sizes = [1, 32], strides = [1, 1]} : vector<8x96xf32> to vector<1x32xf32>
    %32 = vector.extract_strided_slice %24 {offsets = [7, 0], sizes = [1, 32], strides = [1, 1]} : vector<8x96xf32> to vector<1x32xf32>
    %cst_10 = arith.constant dense<0.000000e+00> : vector<16x96xf32>
    %33 = tpu.matmul %17, %20, %cst_10 {dimension_numbers = #tpu.dot_dimension_numbers<[1], [0], [0], [1], [0, 0, 1, 1], [], []>} : vector<16x32xf32>, vector<32x96xf32>, vector<16x96xf32> -> vector<16x96xf32>
    %34 = vector.broadcast %25 : vector<1x96xf32> to vector<16x96xf32>
    %35 = arith.addf %33, %34 : vector<16x96xf32>
    %36 = vector.extract_strided_slice %35 {offsets = [0, 0], sizes = [16, 32], strides = [1, 1]} : vector<16x96xf32> to vector<16x32xf32>
    %37 = vector.extract_strided_slice %35 {offsets = [0, 32], sizes = [16, 32], strides = [1, 1]} : vector<16x96xf32> to vector<16x32xf32>
    %38 = vector.extract_strided_slice %35 {offsets = [0, 64], sizes = [16, 32], strides = [1, 1]} : vector<16x96xf32> to vector<16x32xf32>
    %cst_11 = arith.constant dense<0.000000e+00> : vector<64x32xf32>
    %39 = tpu.matmul %1, %36, %cst_11 {dimension_numbers = #tpu.dot_dimension_numbers<[1], [0], [0], [1], [0, 0, 1, 1], [], []>} : vector<64x16xf32>, vector<16x32xf32>, vector<64x32xf32> -> vector<64x32xf32>
    %40 = arith.mulf %39, %2 : vector<64x32xf32>
    %cst_12 = arith.constant dense<0.000000e+00> : vector<64x16xf32>
    %41 = tpu.matmul %40, %37, %cst_12 {dimension_numbers = #tpu.dot_dimension_numbers<[1], [1], [0], [0], [0, 0, 1, 0], [], []>} : vector<64x32xf32>, vector<16x32xf32>, vector<64x16xf32> -> vector<64x16xf32>
    %42 = arith.addf %41, %4 : vector<64x16xf32>
    %cst_13 = arith.constant dense<0xFF800000> : vector<64xf32>
    %43 = vector.multi_reduction <maximumf>, %42, %cst_13 [1] : vector<64x16xf32> to vector<64xf32>
    %44 = vector.shape_cast %43 : vector<64xf32> to vector<64x1xf32>
    %45 = vector.broadcast %44 : vector<64x1xf32> to vector<64x16xf32>
    %46 = arith.subf %42, %45 : vector<64x16xf32>
    %47 = math.exp %46 : vector<64x16xf32>
    %cst_14 = arith.constant dense<0.000000e+00> : vector<64xf32>
    %48 = vector.multi_reduction <add>, %47, %cst_14 [1] : vector<64x16xf32> to vector<64xf32>
    %49 = vector.shape_cast %48 : vector<64xf32> to vector<64x1xf32>
    %50 = tpu.reciprocal %49 {approx = true} : vector<64x1xf32> -> vector<64x1xf32>
    %51 = vector.broadcast %50 : vector<64x1xf32> to vector<64x16xf32>
    %52 = arith.mulf %47, %51 : vector<64x16xf32>
    %cst_15 = arith.constant dense<0.000000e+00> : vector<64x32xf32>
    %53 = tpu.matmul %52, %38, %cst_15 {dimension_numbers = #tpu.dot_dimension_numbers<[1], [0], [0], [1], [0, 0, 1, 1], [], []>} : vector<64x16xf32>, vector<16x32xf32>, vector<64x32xf32> -> vector<64x32xf32>
    %54 = arith.mulf %53, %2 : vector<64x32xf32>
    %cst_16 = arith.constant dense<0.000000e+00> : vector<16x32xf32>
    %55 = tpu.matmul %3, %54, %cst_16 {dimension_numbers = #tpu.dot_dimension_numbers<[1], [0], [0], [1], [0, 0, 1, 1], [], []>} : vector<16x64xf32>, vector<64x32xf32>, vector<16x32xf32> -> vector<16x32xf32>
    %cst_17 = arith.constant dense<0.000000e+00> : vector<16x32xf32>
    %56 = tpu.matmul %55, %21, %cst_17 {dimension_numbers = #tpu.dot_dimension_numbers<[1], [0], [0], [1], [0, 0, 1, 1], [], []>} : vector<16x32xf32>, vector<32x32xf32>, vector<16x32xf32> -> vector<16x32xf32>
    %57 = vector.broadcast %26 : vector<1x32xf32> to vector<16x32xf32>
    %58 = arith.addf %56, %57 : vector<16x32xf32>
    %59 = arith.addf %17, %58 : vector<16x32xf32>
    %cst_18 = arith.constant dense<0.000000e+00> : vector<16xf32>
    %60 = vector.multi_reduction <add>, %59, %cst_18 [1] : vector<16x32xf32> to vector<16xf32>
    %61 = vector.shape_cast %60 : vector<16xf32> to vector<16x1xf32>
    %cst_19 = arith.constant 3.200000e+01 : f32
    %62 = vector.broadcast %cst_19 : f32 to vector<16x1xf32>
    %63 = arith.divf %61, %62 : vector<16x1xf32>
    %64 = vector.broadcast %63 : vector<16x1xf32> to vector<16x32xf32>
    %65 = arith.subf %59, %64 : vector<16x32xf32>
    %66 = arith.mulf %65, %65 : vector<16x32xf32>
    %cst_20 = arith.constant dense<0.000000e+00> : vector<16xf32>
    %67 = vector.multi_reduction <add>, %66, %cst_20 [1] : vector<16x32xf32> to vector<16xf32>
    %68 = vector.shape_cast %67 : vector<16xf32> to vector<16x1xf32>
    %cst_21 = arith.constant 3.200000e+01 : f32
    %69 = vector.broadcast %cst_21 : f32 to vector<16x1xf32>
    %70 = arith.divf %68, %69 : vector<16x1xf32>
    %71 = vector.broadcast %63 : vector<16x1xf32> to vector<16x32xf32>
    %72 = arith.subf %59, %71 : vector<16x32xf32>
    %cst_22 = arith.constant 9.99999974E-6 : f32
    %73 = vector.broadcast %cst_22 : f32 to vector<16x1xf32>
    %74 = arith.addf %70, %73 : vector<16x1xf32>
    %75 = math.rsqrt %74 : vector<16x1xf32>
    %76 = vector.broadcast %75 : vector<16x1xf32> to vector<16x32xf32>
    %77 = arith.mulf %72, %76 : vector<16x32xf32>
    %78 = vector.broadcast %29 : vector<1x32xf32> to vector<16x32xf32>
    %79 = arith.mulf %77, %78 : vector<16x32xf32>
    %80 = vector.broadcast %30 : vector<1x32xf32> to vector<16x32xf32>
    %81 = arith.addf %79, %80 : vector<16x32xf32>
    %cst_23 = arith.constant dense<0.000000e+00> : vector<16x64xf32>
    %82 = tpu.matmul %81, %22, %cst_23 {dimension_numbers = #tpu.dot_dimension_numbers<[1], [0], [0], [1], [0, 0, 1, 1], [], []>} : vector<16x32xf32>, vector<32x64xf32>, vector<16x64xf32> -> vector<16x64xf32>
    %83 = vector.broadcast %27 : vector<1x64xf32> to vector<16x64xf32>
    %84 = arith.addf %82, %83 : vector<16x64xf32>
    %cst_24 = arith.constant 0.000000e+00 : f32
    %85 = vector.broadcast %cst_24 : f32 to vector<16x64xf32>
    %86 = arith.maximumf %84, %85 : vector<16x64xf32>
    %cst_25 = arith.constant dense<0.000000e+00> : vector<16x32xf32>
    %87 = tpu.matmul %86, %23, %cst_25 {dimension_numbers = #tpu.dot_dimension_numbers<[1], [0], [0], [1], [0, 0, 1, 1], [], []>} : vector<16x64xf32>, vector<64x32xf32>, vector<16x32xf32> -> vector<16x32xf32>
    %88 = vector.broadcast %28 : vector<1x32xf32> to vector<16x32xf32>
    %89 = arith.addf %87, %88 : vector<16x32xf32>
    %90 = arith.addf %81, %89 : vector<16x32xf32>
    %cst_26 = arith.constant dense<0.000000e+00> : vector<16xf32>
    %91 = vector.multi_reduction <add>, %90, %cst_26 [1] : vector<16x32xf32> to vector<16xf32>
    %92 = vector.shape_cast %91 : vector<16xf32> to vector<16x1xf32>
    %cst_27 = arith.constant 3.200000e+01 : f32
    %93 = vector.broadcast %cst_27 : f32 to vector<16x1xf32>
    %94 = arith.divf %92, %93 : vector<16x1xf32>
    %95 = vector.broadcast %94 : vector<16x1xf32> to vector<16x32xf32>
    %96 = arith.subf %90, %95 : vector<16x32xf32>
    %97 = arith.mulf %96, %96 : vector<16x32xf32>
    %cst_28 = arith.constant dense<0.000000e+00> : vector<16xf32>
    %98 = vector.multi_reduction <add>, %97, %cst_28 [1] : vector<16x32xf32> to vector<16xf32>
    %99 = vector.shape_cast %98 : vector<16xf32> to vector<16x1xf32>
    %cst_29 = arith.constant 3.200000e+01 : f32
    %100 = vector.broadcast %cst_29 : f32 to vector<16x1xf32>
    %101 = arith.divf %99, %100 : vector<16x1xf32>
    %102 = vector.broadcast %94 : vector<16x1xf32> to vector<16x32xf32>
    %103 = arith.subf %90, %102 : vector<16x32xf32>
    %cst_30 = arith.constant 9.99999974E-6 : f32
    %104 = vector.broadcast %cst_30 : f32 to vector<16x1xf32>
    %105 = arith.addf %101, %104 : vector<16x1xf32>
    %106 = math.rsqrt %105 : vector<16x1xf32>
    %107 = vector.broadcast %106 : vector<16x1xf32> to vector<16x32xf32>
    %108 = arith.mulf %103, %107 : vector<16x32xf32>
    %109 = vector.broadcast %31 : vector<1x32xf32> to vector<16x32xf32>
    %110 = arith.mulf %108, %109 : vector<16x32xf32>
    %111 = vector.broadcast %32 : vector<1x32xf32> to vector<16x32xf32>
    %112 = arith.addf %110, %111 : vector<16x32xf32>
    %c1 = arith.constant 1 : index
    %c0_31 = arith.constant 0 : index
    %c0_32 = arith.constant 0 : index
    %113 = vector.load %arg4[%c1, %c0_31, %c0_32] : memref<2x168x96xf32, #tpu.memory_space<vmem>>, vector<1x168x96xf32>
    %114 = vector.shape_cast %113 : vector<1x168x96xf32> to vector<168x96xf32>
    %115 = vector.extract_strided_slice %114 {offsets = [0, 0], sizes = [32, 96], strides = [1, 1]} : vector<168x96xf32> to vector<32x96xf32>
    %116 = vector.extract_strided_slice %114 {offsets = [32, 0], sizes = [32, 32], strides = [1, 1]} : vector<168x96xf32> to vector<32x32xf32>
    %117 = vector.extract_strided_slice %114 {offsets = [64, 0], sizes = [32, 64], strides = [1, 1]} : vector<168x96xf32> to vector<32x64xf32>
    %118 = vector.extract_strided_slice %114 {offsets = [96, 0], sizes = [64, 32], strides = [1, 1]} : vector<168x96xf32> to vector<64x32xf32>
    %119 = vector.extract_strided_slice %114 {offsets = [160, 0], sizes = [8, 96], strides = [1, 1]} : vector<168x96xf32> to vector<8x96xf32>
    %120 = vector.extract_strided_slice %119 {offsets = [0, 0], sizes = [1, 96], strides = [1, 1]} : vector<8x96xf32> to vector<1x96xf32>
    %121 = vector.extract_strided_slice %119 {offsets = [1, 0], sizes = [1, 32], strides = [1, 1]} : vector<8x96xf32> to vector<1x32xf32>
    %122 = vector.extract_strided_slice %119 {offsets = [2, 0], sizes = [1, 64], strides = [1, 1]} : vector<8x96xf32> to vector<1x64xf32>
    %123 = vector.extract_strided_slice %119 {offsets = [3, 0], sizes = [1, 32], strides = [1, 1]} : vector<8x96xf32> to vector<1x32xf32>
    %124 = vector.extract_strided_slice %119 {offsets = [4, 0], sizes = [1, 32], strides = [1, 1]} : vector<8x96xf32> to vector<1x32xf32>
    %125 = vector.extract_strided_slice %119 {offsets = [5, 0], sizes = [1, 32], strides = [1, 1]} : vector<8x96xf32> to vector<1x32xf32>
    %126 = vector.extract_strided_slice %119 {offsets = [6, 0], sizes = [1, 32], strides = [1, 1]} : vector<8x96xf32> to vector<1x32xf32>
    %127 = vector.extract_strided_slice %119 {offsets = [7, 0], sizes = [1, 32], strides = [1, 1]} : vector<8x96xf32> to vector<1x32xf32>
    %cst_33 = arith.constant dense<0.000000e+00> : vector<16x96xf32>
    %128 = tpu.matmul %112, %115, %cst_33 {dimension_numbers = #tpu.dot_dimension_numbers<[1], [0], [0], [1], [0, 0, 1, 1], [], []>} : vector<16x32xf32>, vector<32x96xf32>, vector<16x96xf32> -> vector<16x96xf32>
    %129 = vector.broadcast %120 : vector<1x96xf32> to vector<16x96xf32>
    %130 = arith.addf %128, %129 : vector<16x96xf32>
    %131 = vector.extract_strided_slice %130 {offsets = [0, 0], sizes = [16, 32], strides = [1, 1]} : vector<16x96xf32> to vector<16x32xf32>
    %132 = vector.extract_strided_slice %130 {offsets = [0, 32], sizes = [16, 32], strides = [1, 1]} : vector<16x96xf32> to vector<16x32xf32>
    %133 = vector.extract_strided_slice %130 {offsets = [0, 64], sizes = [16, 32], strides = [1, 1]} : vector<16x96xf32> to vector<16x32xf32>
    %cst_34 = arith.constant dense<0.000000e+00> : vector<64x32xf32>
    %134 = tpu.matmul %1, %131, %cst_34 {dimension_numbers = #tpu.dot_dimension_numbers<[1], [0], [0], [1], [0, 0, 1, 1], [], []>} : vector<64x16xf32>, vector<16x32xf32>, vector<64x32xf32> -> vector<64x32xf32>
    %135 = arith.mulf %134, %2 : vector<64x32xf32>
    %cst_35 = arith.constant dense<0.000000e+00> : vector<64x16xf32>
    %136 = tpu.matmul %135, %132, %cst_35 {dimension_numbers = #tpu.dot_dimension_numbers<[1], [1], [0], [0], [0, 0, 1, 0], [], []>} : vector<64x32xf32>, vector<16x32xf32>, vector<64x16xf32> -> vector<64x16xf32>
    %137 = arith.addf %136, %4 : vector<64x16xf32>
    %cst_36 = arith.constant dense<0xFF800000> : vector<64xf32>
    %138 = vector.multi_reduction <maximumf>, %137, %cst_36 [1] : vector<64x16xf32> to vector<64xf32>
    %139 = vector.shape_cast %138 : vector<64xf32> to vector<64x1xf32>
    %140 = vector.broadcast %139 : vector<64x1xf32> to vector<64x16xf32>
    %141 = arith.subf %137, %140 : vector<64x16xf32>
    %142 = math.exp %141 : vector<64x16xf32>
    %cst_37 = arith.constant dense<0.000000e+00> : vector<64xf32>
    %143 = vector.multi_reduction <add>, %142, %cst_37 [1] : vector<64x16xf32> to vector<64xf32>
    %144 = vector.shape_cast %143 : vector<64xf32> to vector<64x1xf32>
    %145 = tpu.reciprocal %144 {approx = true} : vector<64x1xf32> -> vector<64x1xf32>
    %146 = vector.broadcast %145 : vector<64x1xf32> to vector<64x16xf32>
    %147 = arith.mulf %142, %146 : vector<64x16xf32>
    %cst_38 = arith.constant dense<0.000000e+00> : vector<64x32xf32>
    %148 = tpu.matmul %147, %133, %cst_38 {dimension_numbers = #tpu.dot_dimension_numbers<[1], [0], [0], [1], [0, 0, 1, 1], [], []>} : vector<64x16xf32>, vector<16x32xf32>, vector<64x32xf32> -> vector<64x32xf32>
    %149 = arith.mulf %148, %2 : vector<64x32xf32>
    %cst_39 = arith.constant dense<0.000000e+00> : vector<16x32xf32>
    %150 = tpu.matmul %3, %149, %cst_39 {dimension_numbers = #tpu.dot_dimension_numbers<[1], [0], [0], [1], [0, 0, 1, 1], [], []>} : vector<16x64xf32>, vector<64x32xf32>, vector<16x32xf32> -> vector<16x32xf32>
    %cst_40 = arith.constant dense<0.000000e+00> : vector<16x32xf32>
    %151 = tpu.matmul %150, %116, %cst_40 {dimension_numbers = #tpu.dot_dimension_numbers<[1], [0], [0], [1], [0, 0, 1, 1], [], []>} : vector<16x32xf32>, vector<32x32xf32>, vector<16x32xf32> -> vector<16x32xf32>
    %152 = vector.broadcast %121 : vector<1x32xf32> to vector<16x32xf32>
    %153 = arith.addf %151, %152 : vector<16x32xf32>
    %154 = arith.addf %112, %153 : vector<16x32xf32>
    %cst_41 = arith.constant dense<0.000000e+00> : vector<16xf32>
    %155 = vector.multi_reduction <add>, %154, %cst_41 [1] : vector<16x32xf32> to vector<16xf32>
    %156 = vector.shape_cast %155 : vector<16xf32> to vector<16x1xf32>
    %cst_42 = arith.constant 3.200000e+01 : f32
    %157 = vector.broadcast %cst_42 : f32 to vector<16x1xf32>
    %158 = arith.divf %156, %157 : vector<16x1xf32>
    %159 = vector.broadcast %158 : vector<16x1xf32> to vector<16x32xf32>
    %160 = arith.subf %154, %159 : vector<16x32xf32>
    %161 = arith.mulf %160, %160 : vector<16x32xf32>
    %cst_43 = arith.constant dense<0.000000e+00> : vector<16xf32>
    %162 = vector.multi_reduction <add>, %161, %cst_43 [1] : vector<16x32xf32> to vector<16xf32>
    %163 = vector.shape_cast %162 : vector<16xf32> to vector<16x1xf32>
    %cst_44 = arith.constant 3.200000e+01 : f32
    %164 = vector.broadcast %cst_44 : f32 to vector<16x1xf32>
    %165 = arith.divf %163, %164 : vector<16x1xf32>
    %166 = vector.broadcast %158 : vector<16x1xf32> to vector<16x32xf32>
    %167 = arith.subf %154, %166 : vector<16x32xf32>
    %cst_45 = arith.constant 9.99999974E-6 : f32
    %168 = vector.broadcast %cst_45 : f32 to vector<16x1xf32>
    %169 = arith.addf %165, %168 : vector<16x1xf32>
    %170 = math.rsqrt %169 : vector<16x1xf32>
    %171 = vector.broadcast %170 : vector<16x1xf32> to vector<16x32xf32>
    %172 = arith.mulf %167, %171 : vector<16x32xf32>
    %173 = vector.broadcast %124 : vector<1x32xf32> to vector<16x32xf32>
    %174 = arith.mulf %172, %173 : vector<16x32xf32>
    %175 = vector.broadcast %125 : vector<1x32xf32> to vector<16x32xf32>
    %176 = arith.addf %174, %175 : vector<16x32xf32>
    %cst_46 = arith.constant dense<0.000000e+00> : vector<16x64xf32>
    %177 = tpu.matmul %176, %117, %cst_46 {dimension_numbers = #tpu.dot_dimension_numbers<[1], [0], [0], [1], [0, 0, 1, 1], [], []>} : vector<16x32xf32>, vector<32x64xf32>, vector<16x64xf32> -> vector<16x64xf32>
    %178 = vector.broadcast %122 : vector<1x64xf32> to vector<16x64xf32>
    %179 = arith.addf %177, %178 : vector<16x64xf32>
    %cst_47 = arith.constant 0.000000e+00 : f32
    %180 = vector.broadcast %cst_47 : f32 to vector<16x64xf32>
    %181 = arith.maximumf %179, %180 : vector<16x64xf32>
    %cst_48 = arith.constant dense<0.000000e+00> : vector<16x32xf32>
    %182 = tpu.matmul %181, %118, %cst_48 {dimension_numbers = #tpu.dot_dimension_numbers<[1], [0], [0], [1], [0, 0, 1, 1], [], []>} : vector<16x64xf32>, vector<64x32xf32>, vector<16x32xf32> -> vector<16x32xf32>
    %183 = vector.broadcast %123 : vector<1x32xf32> to vector<16x32xf32>
    %184 = arith.addf %182, %183 : vector<16x32xf32>
    %185 = arith.addf %176, %184 : vector<16x32xf32>
    %cst_49 = arith.constant dense<0.000000e+00> : vector<16xf32>
    %186 = vector.multi_reduction <add>, %185, %cst_49 [1] : vector<16x32xf32> to vector<16xf32>
    %187 = vector.shape_cast %186 : vector<16xf32> to vector<16x1xf32>
    %cst_50 = arith.constant 3.200000e+01 : f32
    %188 = vector.broadcast %cst_50 : f32 to vector<16x1xf32>
    %189 = arith.divf %187, %188 : vector<16x1xf32>
    %190 = vector.broadcast %189 : vector<16x1xf32> to vector<16x32xf32>
    %191 = arith.subf %185, %190 : vector<16x32xf32>
    %192 = arith.mulf %191, %191 : vector<16x32xf32>
    %cst_51 = arith.constant dense<0.000000e+00> : vector<16xf32>
    %193 = vector.multi_reduction <add>, %192, %cst_51 [1] : vector<16x32xf32> to vector<16xf32>
    %194 = vector.shape_cast %193 : vector<16xf32> to vector<16x1xf32>
    %cst_52 = arith.constant 3.200000e+01 : f32
    %195 = vector.broadcast %cst_52 : f32 to vector<16x1xf32>
    %196 = arith.divf %194, %195 : vector<16x1xf32>
    %197 = vector.broadcast %189 : vector<16x1xf32> to vector<16x32xf32>
    %198 = arith.subf %185, %197 : vector<16x32xf32>
    %cst_53 = arith.constant 9.99999974E-6 : f32
    %199 = vector.broadcast %cst_53 : f32 to vector<16x1xf32>
    %200 = arith.addf %196, %199 : vector<16x1xf32>
    %201 = math.rsqrt %200 : vector<16x1xf32>
    %202 = vector.broadcast %201 : vector<16x1xf32> to vector<16x32xf32>
    %203 = arith.mulf %198, %202 : vector<16x32xf32>
    %204 = vector.broadcast %126 : vector<1x32xf32> to vector<16x32xf32>
    %205 = arith.mulf %203, %204 : vector<16x32xf32>
    %206 = vector.broadcast %127 : vector<1x32xf32> to vector<16x32xf32>
    %207 = arith.addf %205, %206 : vector<16x32xf32>
    %c0_54 = arith.constant 0 : index
    %c0_55 = arith.constant 0 : index
    %208 = vector.load %arg5[%c0_54, %c0_55] : memref<33x128xf32, #tpu.memory_space<vmem>>, vector<33x128xf32>
    %209 = vector.extract_strided_slice %208 {offsets = [0, 0], sizes = [32, 128], strides = [1, 1]} : vector<33x128xf32> to vector<32x128xf32>
    %cst_56 = arith.constant dense<0.000000e+00> : vector<16x128xf32>
    %210 = tpu.matmul %207, %209, %cst_56 {dimension_numbers = #tpu.dot_dimension_numbers<[1], [0], [0], [1], [0, 0, 1, 1], [], []>} : vector<16x32xf32>, vector<32x128xf32>, vector<16x128xf32> -> vector<16x128xf32>
    %211 = vector.extract_strided_slice %208 {offsets = [32, 0], sizes = [1, 128], strides = [1, 1]} : vector<33x128xf32> to vector<1x128xf32>
    %212 = vector.broadcast %211 : vector<1x128xf32> to vector<16x128xf32>
    %213 = arith.addf %210, %212 : vector<16x128xf32>
    %c0_57 = arith.constant 0 : index
    %c0_58 = arith.constant 0 : index
    %214 = vector.load %arg6[%c0_57, %c0_58] : memref<16x128xf32, #tpu.memory_space<vmem>>, vector<16x128xf32>
    tpu.vector_store %arg6[%c0_57, %c0_58], %213 {strides = array<i32>} : memref<16x128xf32, #tpu.memory_space<vmem>>, vector<16x128xf32>,
    return
  }
}

</mosaic_0001>

<llo_original>
// kernel: transformer_lm_forward.1
$region0: #{transformer_lm_forward.1}
  #allocation0 [shape = 'u32[]', space=smem, size = 0x4, offset = 0x4, fixed_abs, tag = 'smem constant byte address 0x4 - core index']
  #allocation1 [shape = 'u32[144,128]{1,0:T(1,128)}', space=vmem, size = 0x12000, scoped, tag = 'internal scratch']
  %s0 = inlined_call_operand.vmem [shape: s32[16,1], index: 0, kind: input, shape index: {}]
  %s1 = inlined_call_operand.vmem [shape: f32[64,16], index: 1, kind: input, shape index: {}]
  %s2 = inlined_call_operand.vmem [shape: f32[80,32], index: 2, kind: input, shape index: {}]
  %s3 = inlined_call_operand.vmem [shape: f32[144,64], index: 3, kind: input, shape index: {}]
  %s4 = inlined_call_operand.vmem [shape: f32[2,168,96], index: 4, kind: input, shape index: {}]
  %s5 = inlined_call_operand.vmem [shape: f32[33,128], index: 5, kind: input, shape index: {}]
  %s6 = inlined_call_operand.hbm [shape: f32[16,128], index: 6, kind: output, shape index: {}]
  %s7 = sld [smem:[#allocation0]]
  $region34: #{transformer_lm_forward.1} parent=0
    _
  %s9 = ssub.s32 1, %s7
  %s10 = scalar_select 0, %s9, %s7
  $region1: #{transformer_lm_forward.1} parent=0
    #allocation2 [shape = 'u8[8192]{0}', space=vmem, size = 0x2000, scoped, tag = 'output window, operand 0, single buffered']
    #allocation3 [shape = 's32[1]{0}', space=sflag, size = 0x4, scoped, tag = 'scoped memory for transformer_lm_forward.1']
    %11 = vsyncpa [#allocation3], 0
    // Predicated region
    $region2: #{transformer_lm_forward.1} parent=1 // pred_check
      _
    $region3: #{transformer_lm_forward.1} parent=1 // pred_check_branch
      %13 = sbr.rel (0) target = $region5
    $region4: #{transformer_lm_forward.1} parent=1 // pred_region
      _
    $region5: #{transformer_lm_forward.1} parent=1 // pred_fallthru
      _
    // Predicated region
    $region6: #{transformer_lm_forward.1} parent=1 // pred_check
      _
    $region7: #{transformer_lm_forward.1} parent=1 // pred_check_branch
      %15 = sbr.rel (0) target = $region9
    $region8: #{transformer_lm_forward.1} parent=1 // pred_region
      _
    $region9: #{transformer_lm_forward.1} parent=1 // pred_fallthru
      _
    // Predicated region
    $region10: #{transformer_lm_forward.1} parent=1 // pred_check
      _
    $region11: #{transformer_lm_forward.1} parent=1 // pred_check_branch
      %17 = sbr.rel (0) target = $region13
    $region12: #{transformer_lm_forward.1} parent=1 // pred_region
      _
    $region13: #{transformer_lm_forward.1} parent=1 // pred_fallthru
      _
    // Predicated region
    $region14: #{transformer_lm_forward.1} parent=1 // pred_check
      _
    $region15: #{transformer_lm_forward.1} parent=1 // pred_check_branch
      %19 = sbr.rel (0) target = $region17
    $region16: #{transformer_lm_forward.1} parent=1 // pred_region
      _
    $region17: #{transformer_lm_forward.1} parent=1 // pred_fallthru
      _
    // Predicated region
    $region18: #{transformer_lm_forward.1} parent=1 // pred_check
      _
    $region19: #{transformer_lm_forward.1} parent=1 // pred_check_branch
      %21 = sbr.rel (0) target = $region21
    $region20: #{transformer_lm_forward.1} parent=1 // pred_region
      _
    $region21: #{transformer_lm_forward.1} parent=1 // pred_fallthru
      _
    // Predicated region
    $region22: #{transformer_lm_forward.1} parent=1 // pred_check
      _
    $region23: #{transformer_lm_forward.1} parent=1 // pred_check_branch
      %23 = sbr.rel (0) target = $region25
    $region24: #{transformer_lm_forward.1} parent=1 // pred_region
      _
    $region25: #{transformer_lm_forward.1} parent=1 // pred_fallthru
      _
    %v24 = vld [vmem:[%s3] sm:$0xff]
    %v25 = vld [vmem:[%s3 + $0x8] sm:$0xff]
    %v26 = vld [vmem:[%s3 + $0x10] sm:$0xff]
    %v27 = vld [vmem:[%s3 + $0x18] sm:$0xff]
    %v28 = vld [vmem:[%s3 + $0x20] sm:$0xff]
    %v29 = vld [vmem:[%s3 + $0x28] sm:$0xff]
    %v30 = vld [vmem:[%s3 + $0x30] sm:$0xff]
    %v31 = vld [vmem:[%s3 + $0x38] sm:$0xff]
    %v32 = vld [vmem:[%s3 + $0x40] sm:$0xff]
    %v33 = vld [vmem:[%s3 + $0x48] sm:$0xff]
    %v34 = vld [vmem:[%s3 + $0x50] sm:$0xff]
    %v35 = vld [vmem:[%s3 + $0x58] sm:$0xff]
    %v36 = vld [vmem:[%s3 + $0x60] sm:$0xff]
    %v37 = vld [vmem:[%s3 + $0x68] sm:$0xff]
    %v38 = vld [vmem:[%s3 + $0x70] sm:$0xff]
    %v39 = vld [vmem:[%s3 + $0x78] sm:$0xff]
    %v40 = vld [vmem:[%s3 + $0x80] sm:$0xff]
    %v41 = vld [vmem:[%s3 + $0x88] sm:$0xff]
    %v42 = vld [vmem:[%s1] sm:$0xff]
    %v43 = vld [vmem:[%s1 + $0x8] sm:$0xff]
    %v44 = vld [vmem:[%s1 + $0x10] sm:$0xff]
    %v45 = vld [vmem:[%s1 + $0x18] sm:$0xff]
    %v46 = vld [vmem:[%s1 + $0x20] sm:$0xff]
    %v47 = vld [vmem:[%s1 + $0x28] sm:$0xff]
    %v48 = vld [vmem:[%s1 + $0x30] sm:$0xff]
    %v49 = vld [vmem:[%s1 + $0x38] sm:$0xff]
    %v50 = vld [vmem:[%s0] sm:$0xff]
    %v51 = vld [vmem:[%s0 + $0x8] sm:$0xff]
    %v52 = vlaneseq
    %v53 = vand.u32 %v52, 127
    %v54 = vlaneseq
    %v55 = vshrl.u32 %v54, 7
    %v56 = vadd.s32 %v55, 8
    %57 = vset.pattern.permute.xlu0 0
    %58 = vperm.xlu0 %57, %v50
    %v59 = vpop.permute.xlu0 %58
    %60 = vset.pattern.permute.xlu0 0
    %61 = vperm.xlu0 %60, %v51
    %v62 = vpop.permute.xlu0 %61
    %vm63 = vcmp.eq.s32.totalorder %v53, %v59
    %vm64 = vcmp.eq.s32.totalorder %v53, %v62
    %v65 = vadd.s32 %v55, 64
    %v66 = vadd.s32 %v56, 64
    %vm67 = vcmp.eq.s32.totalorder %v53, %v65
    %vm68 = vcmp.eq.s32.totalorder %v53, %v66
    %vm69 = vmor %vm63, %vm67
    %vm70 = vmor %vm64, %vm68
    %v71 = vsel %vm69, 1, 0
    %v72 = vsel %vm70, 1, 0
    %v73 = vcvt.s32.f32 %v71
    %v74 = vcvt.s32.f32 %v72
    %v75 = vld [vmem:[%s2] sm:$0xff]
    %v76 = vld [vmem:[%s2 + $0x8] sm:$0xff]
    %v77 = vld [vmem:[%s2 + $0x10] sm:$0xff]
    %v78 = vld [vmem:[%s2 + $0x18] sm:$0xff]
    %v79 = vld [vmem:[%s2 + $0x20] sm:$0xff]
    %v80 = vld [vmem:[%s2 + $0x28] sm:$0xff]
    %v81 = vld [vmem:[%s2 + $0x30] sm:$0xff]
    %v82 = vld [vmem:[%s2 + $0x38] sm:$0xff]
    %v83 = vld [vmem:[%s2 + $0x40] sm:$0xff]
    %v84 = vld [vmem:[%s2 + $0x48] sm:$0xff]
    %vm85 = vcmask 654336
    %v87 = vsel %vm85, %v73, 0
    %v90 = vsel %vm85, %v74, 0
    %92 = vmatprep.subr.mxu0 0.0
    %93 = vmatpush1.msra.mxu0 %v75
    %94 = vmatprep.subr.mxu0 0.0
    %95 = vmatpush1.msra.mxu0 %v76
    %96 = vmatprep.subr.mxu0 0.0
    %97 = vmatpush1.msra.mxu0 %v77
    %98 = vmatprep.subr.mxu0 0.0
    %99 = vmatpush1.msra.mxu0 %v78
    %100 = vmatprep.subr.mxu0 0.0
    %101 = vmatpush1.msra.mxu0 %v79
    %102 = vmatprep.subr.mxu0 0.0
    %103 = vmatpush1.msra.mxu0 %v80
    %104 = vmatprep.subr.mxu0 0.0
    %105 = vmatpush1.msra.mxu0 %v81
    %106 = vmatprep.subr.mxu0 0.0
    %107 = vmatpush1.msra.mxu0 %v82
    %108 = vmatprep.subr.mxu0 0.0
    %109 = vmatpush1.msra.mxu0 %v83
    %110 = vmatprep.subr.mxu0 0.0
    %111 = vmatpush1.msra.mxu0 %v84
    %112 = vmatprep.subr.mxu0 0.0
    %113 = vmatpush1.msra.mxu0 0.0
    %114 = vmatprep.subr.mxu0 0.0
    %115 = vmatpush1.msra.mxu0 0.0
    %116 = vmatprep.subr.mxu0 0.0
    %117 = vmatpush1.msra.mxu0 0.0
    %118 = vmatprep.subr.mxu0 0.0
    %119 = vmatpush1.msra.mxu0 0.0
    %120 = vmatprep.subr.mxu0 0.0
    %121 = vmatpush1.msra.mxu0 0.0
    %122 = vmatprep.subr.mxu0 0.0
    %123 = vmatpush1.msra.mxu0 0.0
    %124 = vmatprep.subr.mxu0 0.0
    %125 = vmatpush1.msra.mxu0 0.0
    %126 = vmatprep.subr.mxu0 0.0
    %127 = vmatpush1.msra.mxu0 0.0
    %128 = vmatprep.subr.mxu0 0.0
    %129 = vmatpush1.msra.mxu0 0.0
    %130 = vmatprep.subr.mxu0 0.0
    %131 = vmatpush1.msra.mxu0 0.0
    %132 = vmatprep.subr.mxu0 0.0
    %133 = vmatpush1.msra.mxu0 0.0
    %134 = vmatprep.subr.mxu0 0.0
    %135 = vmatpush1.msra.mxu0 0.0
    %136 = vmatprep.subr.mxu0 0.0
    %137 = vmatpush1.msra.mxu0 0.0
    %138 = vmatprep.subr.mxu0 0.0
    %139 = vmatpush1.msra.mxu0 0.0
    %140 = vmatprep.subr.mxu0 0.0
    %141 = vmatpush1.msra.mxu0 0.0
    %142 = vmatprep.subr.mxu0 0.0
    %143 = vmatpush1.msra.mxu0 0.0
    %144 = vmatprep.subr.mxu0 0.0
    %145 = vmatpush1.msra.mxu0 0.0
    %146 = vmatprep.subr.mxu0 0.0
    %147 = vmatpush1.msra.mxu0 0.0
    %148 = vmatprep.subr.mxu0 0.0
    %149 = vmatpush1.msra.mxu0 0.0
    %150 = vmatprep.subr.mxu0 0.0
    %151 = vmatpush1.msra.mxu0 0.0
    %152 = vmatprep.subr.mxu0 0.0
    %153 = vmatpush1.msra.mxu0 0.0
    %154 = vmatprep.subr.mxu0 0.0
    %155 = vmatpush1.msra.mxu0 0.0
    %156 = vmatprep.mubr.f32.mxu0 0.0
    %157 = vmatmul.mubr.f32.gmra.mrb[0].mxu0 %v87
    %v158 = vpop.f32.mrb[0].mxu0
    %v159 = vadd.f32 0.0, %v158
    %v160 = vpop.f32.mrb[0].mxu0
    %161 = vmatprep.mubr.f32.mxu0 0.0
    %162 = vmatmul.mubr.f32.gmra.mrb[0].mxu0 %v90
    %v163 = vpop.f32.mrb[0].mxu0
    %v164 = vadd.f32 0.0, %v163
    %v165 = vpop.f32.mrb[0].mxu0
    %166 = vdwg.mxu0
    %v167 = vld [vmem:[%s4] sm:$0xff]
    %v168 = vld [vmem:[%s4 + $0x8] sm:$0xff]
    %v169 = vld [vmem:[%s4 + $0x10] sm:$0xff]
    %v170 = vld [vmem:[%s4 + $0x18] sm:$0xff]
    %v171 = vld [vmem:[%s4 + $0x20] sm:$0xff]
    %v172 = vld [vmem:[%s4 + $0x28] sm:$0xff]
    %v173 = vld [vmem:[%s4 + $0x30] sm:$0xff]
    %v174 = vld [vmem:[%s4 + $0x38] sm:$0xff]
    %v175 = vld [vmem:[%s4 + $0x40] sm:$0xff]
    %v176 = vld [vmem:[%s4 + $0x48] sm:$0xff]
    %v177 = vld [vmem:[%s4 + $0x50] sm:$0xff]
    %v178 = vld [vmem:[%s4 + $0x58] sm:$0xff]
    %v179 = vld [vmem:[%s4 + $0x60] sm:$0xff]
    %v180 = vld [vmem:[%s4 + $0x68] sm:$0xff]
    %v181 = vld [vmem:[%s4 + $0x70] sm:$0xff]
    %v182 = vld [vmem:[%s4 + $0x78] sm:$0xff]
    %v183 = vld [vmem:[%s4 + $0x80] sm:$0xff]
    %v184 = vld [vmem:[%s4 + $0x88] sm:$0xff]
    %v185 = vld [vmem:[%s4 + $0x90] sm:$0xff]
    %v186 = vld [vmem:[%s4 + $0x98] sm:$0xff]
    %v187 = vld [vmem:[%s4 + $0xa0] sm:$0xff]
    %v188 = vlaneseq
    %v189 = vshrl.u32 %v188, 7
    %v190 = vsub.s32 0, %v189
    %v191 = vrot.slane %v187, %v190
    %vm192 = vcmask 261120
    %v194 = vsel %vm192, %v159, 0
    %v197 = vsel %vm192, %v164, 0
    %199 = vmatprep.subr.mxu0 0.0
    %200 = vmatpush1.msra.mxu0 %v167
    %201 = vmatprep.subr.mxu0 0.0
    %202 = vmatpush1.msra.mxu0 %v168
    %203 = vmatprep.subr.mxu0 0.0
    %204 = vmatpush1.msra.mxu0 %v169
    %205 = vmatprep.subr.mxu0 0.0
    %206 = vmatpush1.msra.mxu0 %v170
    %207 = vmatprep.subr.mxu0 0.0
    %208 = vmatpush1.msra.mxu0 0.0
    %209 = vmatprep.subr.mxu0 0.0
    %210 = vmatpush1.msra.mxu0 0.0
    %211 = vmatprep.subr.mxu0 0.0
    %212 = vmatpush1.msra.mxu0 0.0
    %213 = vmatprep.subr.mxu0 0.0
    %214 = vmatpush1.msra.mxu0 0.0
    %215 = vmatprep.subr.mxu0 0.0
    %216 = vmatpush1.msra.mxu0 0.0
    %217 = vmatprep.subr.mxu0 0.0
    %218 = vmatpush1.msra.mxu0 0.0
    %219 = vmatprep.subr.mxu0 0.0
    %220 = vmatpush1.msra.mxu0 0.0
    %221 = vmatprep.subr.mxu0 0.0
    %222 = vmatpush1.msra.mxu0 0.0
    %223 = vmatprep.subr.mxu0 0.0
    %224 = vmatpush1.msra.mxu0 0.0
    %225 = vmatprep.subr.mxu0 0.0
    %226 = vmatpush1.msra.mxu0 0.0
    %227 = vmatprep.subr.mxu0 0.0
    %228 = vmatpush1.msra.mxu0 0.0
    %229 = vmatprep.subr.mxu0 0.0
    %230 = vmatpush1.msra.mxu0 0.0
    %231 = vmatprep.subr.mxu0 0.0
    %232 = vmatpush1.msra.mxu0 0.0
    %233 = vmatprep.subr.mxu0 0.0
    %234 = vmatpush1.msra.mxu0 0.0
    %235 = vmatprep.subr.mxu0 0.0
    %236 = vmatpush1.msra.mxu0 0.0
    %237 = vmatprep.subr.mxu0 0.0
    %238 = vmatpush1.msra.mxu0 0.0
    %239 = vmatprep.subr.mxu0 0.0
    %240 = vmatpush1.msra.mxu0 0.0
    %241 = vmatprep.subr.mxu0 0.0
    %242 = vmatpush1.msra.mxu0 0.0
    %243 = vmatprep.subr.mxu0 0.0
    %244 = vmatpush1.msra.mxu0 0.0
    %245 = vmatprep.subr.mxu0 0.0
    %246 = vmatpush1.msra.mxu0 0.0
    %247 = vmatprep.subr.mxu0 0.0
    %248 = vmatpush1.msra.mxu0 0.0
    %249 = vmatprep.subr.mxu0 0.0
    %250 = vmatpush1.msra.mxu0 0.0
    %251 = vmatprep.subr.mxu0 0.0
    %252 = vmatpush1.msra.mxu0 0.0
    %253 = vmatprep.subr.mxu0 0.0
    %254 = vmatpush1.msra.mxu0 0.0
    %255 = vmatprep.subr.mxu0 0.0
    %256 = vmatpush1.msra.mxu0 0.0
    %257 = vmatprep.subr.mxu0 0.0
    %258 = vmatpush1.msra.mxu0 0.0
    %259 = vmatprep.subr.mxu0 0.0
    %260 = vmatpush1.msra.mxu0 0.0
    %261 = vmatprep.subr.mxu0 0.0
    %262 = vmatpush1.msra.mxu0 0.0
    %263 = vmatprep.mubr.f32.mxu0 0.0
    %264 = vmatmul.mubr.f32.gmra.mrb[0].mxu0 %v194
    %v265 = vpop.f32.mrb[0].mxu0
    %v266 = vadd.f32 %v191, %v265
    %v267 = vpop.f32.mrb[0].mxu0
    %268 = vmatprep.mubr.f32.mxu0 0.0
    %269 = vmatmul.mubr.f32.gmra.mrb[0].mxu0 %v197
    %v270 = vpop.f32.mrb[0].mxu0
    %v271 = vadd.f32 %v191, %v270
    %v272 = vpop.f32.mrb[0].mxu0
    %273 = vdwg.mxu0
    %vm274 = vcmask 130048
    %v276 = vsel %vm274, %v24, 0
    %v279 = vsel %vm274, %v25, 0
    %v282 = vsel %vm274, %v26, 0
    %v285 = vsel %vm274, %v27, 0
    %v288 = vsel %vm274, %v28, 0
    %v291 = vsel %vm274, %v29, 0
    %v294 = vsel %vm274, %v30, 0
    %v297 = vsel %vm274, %v31, 0
    %299 = vmatprep.subr.mxu0 0.0
    %300 = vmatpush1.msra.mxu0 %v266
    %301 = vmatprep.subr.mxu0 0.0
    %302 = vmatpush1.msra.mxu0 %v271
    %303 = vmatprep.subr.mxu0 0.0
    %304 = vmatpush1.msra.mxu0 0.0
    %305 = vmatprep.subr.mxu0 0.0
    %306 = vmatpush1.msra.mxu0 0.0
    %307 = vmatprep.subr.mxu0 0.0
    %308 = vmatpush1.msra.mxu0 0.0
    %309 = vmatprep.subr.mxu0 0.0
    %310 = vmatpush1.msra.mxu0 0.0
    %311 = vmatprep.subr.mxu0 0.0
    %312 = vmatpush1.msra.mxu0 0.0
    %313 = vmatprep.subr.mxu0 0.0
    %314 = vmatpush1.msra.mxu0 0.0
    %315 = vmatprep.subr.mxu0 0.0
    %316 = vmatpush1.msra.mxu0 0.0
    %317 = vmatprep.subr.mxu0 0.0
    %318 = vmatpush1.msra.mxu0 0.0
    %319 = vmatprep.subr.mxu0 0.0
    %320 = vmatpush1.msra.mxu0 0.0
    %321 = vmatprep.subr.mxu0 0.0
    %322 = vmatpush1.msra.mxu0 0.0
    %323 = vmatprep.subr.mxu0 0.0
    %324 = vmatpush1.msra.mxu0 0.0
    %325 = vmatprep.subr.mxu0 0.0
    %326 = vmatpush1.msra.mxu0 0.0
    %327 = vmatprep.subr.mxu0 0.0
    %328 = vmatpush1.msra.mxu0 0.0
    %329 = vmatprep.subr.mxu0 0.0
    %330 = vmatpush1.msra.mxu0 0.0
    %331 = vmatprep.subr.mxu0 0.0
    %332 = vmatpush1.msra.mxu0 0.0
    %333 = vmatprep.subr.mxu0 0.0
    %334 = vmatpush1.msra.mxu0 0.0
    %335 = vmatprep.subr.mxu0 0.0
    %336 = vmatpush1.msra.mxu0 0.0
    %337 = vmatprep.subr.mxu0 0.0
    %338 = vmatpush1.msra.mxu0 0.0
    %339 = vmatprep.subr.mxu0 0.0
    %340 = vmatpush1.msra.mxu0 0.0
    %341 = vmatprep.subr.mxu0 0.0
    %342 = vmatpush1.msra.mxu0 0.0
    %343 = vmatprep.subr.mxu0 0.0
    %344 = vmatpush1.msra.mxu0 0.0
    %345 = vmatprep.subr.mxu0 0.0
    %346 = vmatpush1.msra.mxu0 0.0
    %347 = vmatprep.subr.mxu0 0.0
    %348 = vmatpush1.msra.mxu0 0.0
    %349 = vmatprep.subr.mxu0 0.0
    %350 = vmatpush1.msra.mxu0 0.0
    %351 = vmatprep.subr.mxu0 0.0
    %352 = vmatpush1.msra.mxu0 0.0
    %353 = vmatprep.subr.mxu0 0.0
    %354 = vmatpush1.msra.mxu0 0.0
    %355 = vmatprep.subr.mxu0 0.0
    %356 = vmatpush1.msra.mxu0 0.0
    %357 = vmatprep.subr.mxu0 0.0
    %358 = vmatpush1.msra.mxu0 0.0
    %359 = vmatprep.subr.mxu0 0.0
    %360 = vmatpush1.msra.mxu0 0.0
    %361 = vmatprep.subr.mxu0 0.0
    %362 = vmatpush1.msra.mxu0 0.0
    %363 = vmatprep.mubr.f32.mxu0 0.0
    %364 = vmatmul.mubr.f32.gmra.mrb[0].mxu0 %v276
    %v365 = vpop.f32.mrb[0].mxu0
    %v366 = vadd.f32 0.0, %v365
    %v367 = vpop.f32.mrb[0].mxu0
    %368 = vmatprep.mubr.f32.mxu0 0.0
    %369 = vmatmul.mubr.f32.gmra.mrb[0].mxu0 %v279
    %v370 = vpop.f32.mrb[0].mxu0
    %v371 = vadd.f32 0.0, %v370
    %v372 = vpop.f32.mrb[0].mxu0
    %373 = vmatprep.mubr.f32.mxu0 0.0
    %374 = vmatmul.mubr.f32.gmra.mrb[0].mxu0 %v282
    %v375 = vpop.f32.mrb[0].mxu0
    %v376 = vadd.f32 0.0, %v375
    %v377 = vpop.f32.mrb[0].mxu0
    %378 = vmatprep.mubr.f32.mxu0 0.0
    %379 = vmatmul.mubr.f32.gmra.mrb[0].mxu0 %v285
    %v380 = vpop.f32.mrb[0].mxu0
    %v381 = vadd.f32 0.0, %v380
    %v382 = vpop.f32.mrb[0].mxu0
    %383 = vmatprep.mubr.f32.mxu0 0.0
    %384 = vmatmul.mubr.f32.gmra.mrb[0].mxu0 %v288
    %v385 = vpop.f32.mrb[0].mxu0
    %v386 = vadd.f32 0.0, %v385
    %v387 = vpop.f32.mrb[0].mxu0
    %388 = vmatprep.mubr.f32.mxu0 0.0
    %389 = vmatmul.mubr.f32.gmra.mrb[0].mxu0 %v291
    %v390 = vpop.f32.mrb[0].mxu0
    %v391 = vadd.f32 0.0, %v390
    %v392 = vpop.f32.mrb[0].mxu0
    %393 = vmatprep.mubr.f32.mxu0 0.0
    %394 = vmatmul.mubr.f32.gmra.mrb[0].mxu0 %v294
    %v395 = vpop.f32.mrb[0].mxu0
    %v396 = vadd.f32 0.0, %v395
    %v397 = vpop.f32.mrb[0].mxu0
    %398 = vmatprep.mubr.f32.mxu0 0.0
    %399 = vmatmul.mubr.f32.gmra.mrb[0].mxu0 %v297
    %v400 = vpop.f32.mrb[0].mxu0
    %v401 = vadd.f32 0.0, %v400
    %v402 = vpop.f32.mrb[0].mxu0
    %403 = vdwg.mxu0
    %v404 = vmul.f32 %v366, %v32
    %v405 = vmul.f32 %v371, %v33
    %v406 = vmul.f32 %v376, %v34
    %v407 = vmul.f32 %v381, %v35
    %v408 = vmul.f32 %v386, %v36
    %v409 = vmul.f32 %v391, %v37
    %v410 = vmul.f32 %v396, %v38
    %v411 = vmul.f32 %v401, %v39
    %414 = vrot.lane.b32.xlu0 %v266, 96
    %v415 = vpop.permute.xlu0 %414
    %416 = vrot.lane.b32.xlu0 %v271, 96
    %v417 = vpop.permute.xlu0 %416
    %v419 = vsel %vm192, %v404, 0
    %v422 = vsel %vm192, %v405, 0
    %v425 = vsel %vm192, %v406, 0
    %v428 = vsel %vm192, %v407, 0
    %v431 = vsel %vm192, %v408, 0
    %v434 = vsel %vm192, %v409, 0
    %v437 = vsel %vm192, %v410, 0
    %v440 = vsel %vm192, %v411, 0
    %v442 = vsel %vm192, %v415, 0
    %v444 = vsel %vm192, %v417, 0
    %446 = vmatprep.subr.mxu0 0.0
    %447 = vmatpush1.xpose.msra.mxu0 %v442
    %448 = vmatprep.subr.mxu0 0.0
    %449 = vmatpush1.xpose.msra.mxu0 %v444
    %450 = vmatprep.subr.mxu0 0.0
    %451 = vmatpush1.xpose.msra.mxu0 0.0
    %452 = vmatprep.subr.mxu0 0.0
    %453 = vmatpush1.xpose.msra.mxu0 0.0
    %454 = vmatprep.subr.mxu0 0.0
    %455 = vmatpush1.xpose.msra.mxu0 0.0
    %456 = vmatprep.subr.mxu0 0.0
    %457 = vmatpush1.xpose.msra.mxu0 0.0
    %458 = vmatprep.subr.mxu0 0.0
    %459 = vmatpush1.xpose.msra.mxu0 0.0
    %460 = vmatprep.subr.mxu0 0.0
    %461 = vmatpush1.xpose.msra.mxu0 0.0
    %462 = vmatprep.subr.mxu0 0.0
    %463 = vmatpush1.xpose.msra.mxu0 0.0
    %464 = vmatprep.subr.mxu0 0.0
    %465 = vmatpush1.xpose.msra.mxu0 0.0
    %466 = vmatprep.subr.mxu0 0.0
    %467 = vmatpush1.xpose.msra.mxu0 0.0
    %468 = vmatprep.subr.mxu0 0.0
    %469 = vmatpush1.xpose.msra.mxu0 0.0
    %470 = vmatprep.subr.mxu0 0.0
    %471 = vmatpush1.xpose.msra.mxu0 0.0
    %472 = vmatprep.subr.mxu0 0.0
    %473 = vmatpush1.xpose.msra.mxu0 0.0
    %474 = vmatprep.subr.mxu0 0.0
    %475 = vmatpush1.xpose.msra.mxu0 0.0
    %476 = vmatprep.subr.mxu0 0.0
    %477 = vmatpush1.xpose.msra.mxu0 0.0
    %478 = vmatprep.subr.mxu0 0.0
    %479 = vmatpush1.xpose.msra.mxu0 0.0
    %480 = vmatprep.subr.mxu0 0.0
    %481 = vmatpush1.xpose.msra.mxu0 0.0
    %482 = vmatprep.subr.mxu0 0.0
    %483 = vmatpush1.xpose.msra.mxu0 0.0
    %484 = vmatprep.subr.mxu0 0.0
    %485 = vmatpush1.xpose.msra.mxu0 0.0
    %486 = vmatprep.subr.mxu0 0.0
    %487 = vmatpush1.xpose.msra.mxu0 0.0
    %488 = vmatprep.subr.mxu0 0.0
    %489 = vmatpush1.xpose.msra.mxu0 0.0
    %490 = vmatprep.subr.mxu0 0.0
    %491 = vmatpush1.xpose.msra.mxu0 0.0
    %492 = vmatprep.subr.mxu0 0.0
    %493 = vmatpush1.xpose.msra.mxu0 0.0
    %494 = vmatprep.subr.mxu0 0.0
    %495 = vmatpush1.xpose.msra.mxu0 0.0
    %496 = vmatprep.subr.mxu0 0.0
    %497 = vmatpush1.xpose.msra.mxu0 0.0
    %498 = vmatprep.subr.mxu0 0.0
    %499 = vmatpush1.xpose.msra.mxu0 0.0
    %500 = vmatprep.subr.mxu0 0.0
    %501 = vmatpush1.xpose.msra.mxu0 0.0
    %502 = vmatprep.subr.mxu0 0.0
    %503 = vmatpush1.xpose.msra.mxu0 0.0
    %504 = vmatprep.subr.mxu0 0.0
    %505 = vmatpush1.xpose.msra.mxu0 0.0
    %506 = vmatprep.subr.mxu0 0.0
    %507 = vmatpush1.xpose.msra.mxu0 0.0
    %508 = vmatprep.subr.mxu0 0.0
    %509 = vmatpush1.xpose.msra.mxu0 0.0
    %510 = vmatprep.mubr.f32.mxu0 0.0
    %511 = vmatmul.mubr.f32.gmra.mrb[0].mxu0 %v419
    %v512 = vpop.f32.mrb[0].mxu0
    %v513 = vadd.f32 %v42, %v512
    %v514 = vpop.f32.mrb[0].mxu0
    %515 = vmatprep.mubr.f32.mxu0 0.0
    %516 = vmatmul.mubr.f32.gmra.mrb[0].mxu0 %v422
    %v517 = vpop.f32.mrb[0].mxu0
    %v518 = vadd.f32 %v43, %v517
    %v519 = vpop.f32.mrb[0].mxu0
    %520 = vmatprep.mubr.f32.mxu0 0.0
    %521 = vmatmul.mubr.f32.gmra.mrb[0].mxu0 %v425
    %v522 = vpop.f32.mrb[0].mxu0
    %v523 = vadd.f32 %v44, %v522
    %v524 = vpop.f32.mrb[0].mxu0
    %525 = vmatprep.mubr.f32.mxu0 0.0
    %526 = vmatmul.mubr.f32.gmra.mrb[0].mxu0 %v428
    %v527 = vpop.f32.mrb[0].mxu0
    %v528 = vadd.f32 %v45, %v527
    %v529 = vpop.f32.mrb[0].mxu0
    %530 = vmatprep.mubr.f32.mxu0 0.0
    %531 = vmatmul.mubr.f32.gmra.mrb[0].mxu0 %v431
    %v532 = vpop.f32.mrb[0].mxu0
    %v533 = vadd.f32 %v46, %v532
    %v534 = vpop.f32.mrb[0].mxu0
    %535 = vmatprep.mubr.f32.mxu0 0.0
    %536 = vmatmul.mubr.f32.gmra.mrb[0].mxu0 %v434
    %v537 = vpop.f32.mrb[0].mxu0
    %v538 = vadd.f32 %v47, %v537
    %v539 = vpop.f32.mrb[0].mxu0
    %540 = vmatprep.mubr.f32.mxu0 0.0
    %541 = vmatmul.mubr.f32.gmra.mrb[0].mxu0 %v437
    %v542 = vpop.f32.mrb[0].mxu0
    %v543 = vadd.f32 %v48, %v542
    %v544 = vpop.f32.mrb[0].mxu0
    %545 = vmatprep.mubr.f32.mxu0 0.0
    %546 = vmatmul.mubr.f32.gmra.mrb[0].mxu0 %v440
    %v547 = vpop.f32.mrb[0].mxu0
    %v548 = vadd.f32 %v49, %v547
    %v549 = vpop.f32.mrb[0].mxu0
    %550 = vdwg.mxu0
    %v551 = vsel %vm274, %v513, -inf
    %552 = vmax.xlane.f32.xlu0 %v551
    %v553 = vpop.xlane.xlu0 %552
    %v554 = vsel %vm274, %v518, -inf
    %555 = vmax.xlane.f32.xlu0 %v554
    %v556 = vpop.xlane.xlu0 %555
    %v557 = vsel %vm274, %v523, -inf
    %558 = vmax.xlane.f32.xlu0 %v557
    %v559 = vpop.xlane.xlu0 %558
    %v560 = vsel %vm274, %v528, -inf
    %561 = vmax.xlane.f32.xlu0 %v560
    %v562 = vpop.xlane.xlu0 %561
    %v563 = vsel %vm274, %v533, -inf
    %564 = vmax.xlane.f32.xlu0 %v563
    %v565 = vpop.xlane.xlu0 %564
    %v566 = vsel %vm274, %v538, -inf
    %567 = vmax.xlane.f32.xlu0 %v566
    %v568 = vpop.xlane.xlu0 %567
    %v569 = vsel %vm274, %v543, -inf
    %570 = vmax.xlane.f32.xlu0 %v569
    %v571 = vpop.xlane.xlu0 %570
    %v572 = vsel %vm274, %v548, -inf
    %573 = vmax.xlane.f32.xlu0 %v572
    %v574 = vpop.xlane.xlu0 %573
    %v575 = vsub.f32 %v513, %v553
    %v576 = vsub.f32 %v518, %v556
    %v577 = vsub.f32 %v523, %v559
    %v578 = vsub.f32 %v528, %v562
    %v579 = vsub.f32 %v533, %v565
    %v580 = vsub.f32 %v538, %v568
    %v581 = vsub.f32 %v543, %v571
    %v582 = vsub.f32 %v548, %v574
    %v583 = vmul.f32 %v575, 1.442695
    %v584 = vpow.pop %v583
    %v585 = vmul.f32 %v576, 1.442695
    %v586 = vpow.pop %v585
    %v587 = vmul.f32 %v577, 1.442695
    %v588 = vpow.pop %v587
    %v589 = vmul.f32 %v578, 1.442695
    %v590 = vpow.pop %v589
    %v591 = vmul.f32 %v579, 1.442695
    %v592 = vpow.pop %v591
    %v593 = vmul.f32 %v580, 1.442695
    %v594 = vpow.pop %v593
    %v595 = vmul.f32 %v581, 1.442695
    %v596 = vpow.pop %v595
    %v597 = vmul.f32 %v582, 1.442695
    %v598 = vpow.pop %v597
    %v599 = vsel %vm274, %v584, 0.0
    %600 = vadd.xlane.f32.xlu0 %v599
    %v601 = vpop.xlane.xlu0 %600
    %v602 = vsel %vm274, %v586, 0.0
    %603 = vadd.xlane.f32.xlu0 %v602
    %v604 = vpop.xlane.xlu0 %603
    %v605 = vsel %vm274, %v588, 0.0
    %606 = vadd.xlane.f32.xlu0 %v605
    %v607 = vpop.xlane.xlu0 %606
    %v608 = vsel %vm274, %v590, 0.0
    %609 = vadd.xlane.f32.xlu0 %v608
    %v610 = vpop.xlane.xlu0 %609
    %v611 = vsel %vm274, %v592, 0.0
    %612 = vadd.xlane.f32.xlu0 %v611
    %v613 = vpop.xlane.xlu0 %612
    %v614 = vsel %vm274, %v594, 0.0
    %615 = vadd.xlane.f32.xlu0 %v614
    %v616 = vpop.xlane.xlu0 %615
    %v617 = vsel %vm274, %v596, 0.0
    %618 = vadd.xlane.f32.xlu0 %v617
    %v619 = vpop.xlane.xlu0 %618
    %v620 = vsel %vm274, %v598, 0.0
    %621 = vadd.xlane.f32.xlu0 %v620
    %v622 = vpop.xlane.xlu0 %621
    %v623 = vrcp.pop %v601
    %v624 = vrcp.pop %v604
    %v625 = vrcp.pop %v607
    %v626 = vrcp.pop %v610
    %v627 = vrcp.pop %v613
    %v628 = vrcp.pop %v616
    %v629 = vrcp.pop %v619
    %v630 = vrcp.pop %v622
    %v631 = vmul.f32 %v584, %v623
    %v632 = vmul.f32 %v586, %v624
    %v633 = vmul.f32 %v588, %v625
    %v634 = vmul.f32 %v590, %v626
    %v635 = vmul.f32 %v592, %v627
    %v636 = vmul.f32 %v594, %v628
    %v637 = vmul.f32 %v596, %v629
    %v638 = vmul.f32 %v598, %v630
    %639 = vrot.lane.b32.xlu0 %v266, 64
    %v640 = vpop.permute.xlu0 %639
    %641 = vrot.lane.b32.xlu0 %v271, 64
    %v642 = vpop.permute.xlu0 %641
    %v646 = vsel %vm274, %v631, 0
    %v649 = vsel %vm274, %v632, 0
    %v652 = vsel %vm274, %v633, 0
    %v655 = vsel %vm274, %v634, 0
    %v658 = vsel %vm274, %v635, 0
    %v661 = vsel %vm274, %v636, 0
    %v664 = vsel %vm274, %v637, 0
    %v667 = vsel %vm274, %v638, 0
    %669 = vmatprep.subr.mxu0 0.0
    %670 = vmatpush1.msra.mxu0 %v640
    %671 = vmatprep.subr.mxu0 0.0
    %672 = vmatpush1.msra.mxu0 %v642
    %673 = vmatprep.subr.mxu0 0.0
    %674 = vmatpush1.msra.mxu0 0.0
    %675 = vmatprep.subr.mxu0 0.0
    %676 = vmatpush1.msra.mxu0 0.0
    %677 = vmatprep.subr.mxu0 0.0
    %678 = vmatpush1.msra.mxu0 0.0
    %679 = vmatprep.subr.mxu0 0.0
    %680 = vmatpush1.msra.mxu0 0.0
    %681 = vmatprep.subr.mxu0 0.0
    %682 = vmatpush1.msra.mxu0 0.0
    %683 = vmatprep.subr.mxu0 0.0
    %684 = vmatpush1.msra.mxu0 0.0
    %685 = vmatprep.subr.mxu0 0.0
    %686 = vmatpush1.msra.mxu0 0.0
    %687 = vmatprep.subr.mxu0 0.0
    %688 = vmatpush1.msra.mxu0 0.0
    %689 = vmatprep.subr.mxu0 0.0
    %690 = vmatpush1.msra.mxu0 0.0
    %691 = vmatprep.subr.mxu0 0.0
    %692 = vmatpush1.msra.mxu0 0.0
    %693 = vmatprep.subr.mxu0 0.0
    %694 = vmatpush1.msra.mxu0 0.0
    %695 = vmatprep.subr.mxu0 0.0
    %696 = vmatpush1.msra.mxu0 0.0
    %697 = vmatprep.subr.mxu0 0.0
    %698 = vmatpush1.msra.mxu0 0.0
    %699 = vmatprep.subr.mxu0 0.0
    %700 = vmatpush1.msra.mxu0 0.0
    %701 = vmatprep.subr.mxu0 0.0
    %702 = vmatpush1.msra.mxu0 0.0
    %703 = vmatprep.subr.mxu0 0.0
    %704 = vmatpush1.msra.mxu0 0.0
    %705 = vmatprep.subr.mxu0 0.0
    %706 = vmatpush1.msra.mxu0 0.0
    %707 = vmatprep.subr.mxu0 0.0
    %708 = vmatpush1.msra.mxu0 0.0
    %709 = vmatprep.subr.mxu0 0.0
    %710 = vmatpush1.msra.mxu0 0.0
    %711 = vmatprep.subr.mxu0 0.0
    %712 = vmatpush1.msra.mxu0 0.0
    %713 = vmatprep.subr.mxu0 0.0
    %714 = vmatpush1.msra.mxu0 0.0
    %715 = vmatprep.subr.mxu0 0.0
    %716 = vmatpush1.msra.mxu0 0.0
    %717 = vmatprep.subr.mxu0 0.0
    %718 = vmatpush1.msra.mxu0 0.0
    %719 = vmatprep.subr.mxu0 0.0
    %720 = vmatpush1.msra.mxu0 0.0
    %721 = vmatprep.subr.mxu0 0.0
    %722 = vmatpush1.msra.mxu0 0.0
    %723 = vmatprep.subr.mxu0 0.0
    %724 = vmatpush1.msra.mxu0 0.0
    %725 = vmatprep.subr.mxu0 0.0
    %726 = vmatpush1.msra.mxu0 0.0
    %727 = vmatprep.subr.mxu0 0.0
    %728 = vmatpush1.msra.mxu0 0.0
    %729 = vmatprep.subr.mxu0 0.0
    %730 = vmatpush1.msra.mxu0 0.0
    %731 = vmatprep.subr.mxu0 0.0
    %732 = vmatpush1.msra.mxu0 0.0
    %733 = vmatprep.mubr.f32.mxu0 0.0
    %734 = vmatmul.mubr.f32.gmra.mrb[0].mxu0 %v646
    %v735 = vpop.f32.mrb[0].mxu0
    %v736 = vadd.f32 0.0, %v735
    %v737 = vpop.f32.mrb[0].mxu0
    %738 = vmatprep.mubr.f32.mxu0 0.0
    %739 = vmatmul.mubr.f32.gmra.mrb[0].mxu0 %v649
    %v740 = vpop.f32.mrb[0].mxu0
    %v741 = vadd.f32 0.0, %v740
    %v742 = vpop.f32.mrb[0].mxu0
    %743 = vmatprep.mubr.f32.mxu0 0.0
    %744 = vmatmul.mubr.f32.gmra.mrb[0].mxu0 %v652
    %v745 = vpop.f32.mrb[0].mxu0
    %v746 = vadd.f32 0.0, %v745
    %v747 = vpop.f32.mrb[0].mxu0
    %748 = vmatprep.mubr.f32.mxu0 0.0
    %749 = vmatmul.mubr.f32.gmra.mrb[0].mxu0 %v655
    %v750 = vpop.f32.mrb[0].mxu0
    %v751 = vadd.f32 0.0, %v750
    %v752 = vpop.f32.mrb[0].mxu0
    %753 = vmatprep.mubr.f32.mxu0 0.0
    %754 = vmatmul.mubr.f32.gmra.mrb[0].mxu0 %v658
    %v755 = vpop.f32.mrb[0].mxu0
    %v756 = vadd.f32 0.0, %v755
    %v757 = vpop.f32.mrb[0].mxu0
    %758 = vmatprep.mubr.f32.mxu0 0.0
    %759 = vmatmul.mubr.f32.gmra.mrb[0].mxu0 %v661
    %v760 = vpop.f32.mrb[0].mxu0
    %v761 = vadd.f32 0.0, %v760
    %v762 = vpop.f32.mrb[0].mxu0
    %763 = vmatprep.mubr.f32.mxu0 0.0
    %764 = vmatmul.mubr.f32.gmra.mrb[0].mxu0 %v664
    %v765 = vpop.f32.mrb[0].mxu0
    %v766 = vadd.f32 0.0, %v765
    %v767 = vpop.f32.mrb[0].mxu0
    %768 = vmatprep.mubr.f32.mxu0 0.0
    %769 = vmatmul.mubr.f32.gmra.mrb[0].mxu0 %v667
    %v770 = vpop.f32.mrb[0].mxu0
    %v771 = vadd.f32 0.0, %v770
    %v772 = vpop.f32.mrb[0].mxu0
    %773 = vdwg.mxu0
    %v774 = vmul.f32 %v736, %v32
    %v775 = vmul.f32 %v741, %v33
    %v776 = vmul.f32 %v746, %v34
    %v777 = vmul.f32 %v751, %v35
    %v778 = vmul.f32 %v756, %v36
    %v779 = vmul.f32 %v761, %v37
    %v780 = vmul.f32 %v766, %v38
    %v781 = vmul.f32 %v771, %v39
    %vm782 = vcmask 523264
    %v784 = vsel %vm782, %v40, 0
    %v787 = vsel %vm782, %v41, 0
    %789 = vmatprep.subr.mxu0 0.0
    %790 = vmatpush1.msra.mxu0 %v774
    %791 = vmatprep.subr.mxu0 0.0
    %792 = vmatpush1.msra.mxu0 %v775
    %793 = vmatprep.subr.mxu0 0.0
    %794 = vmatpush1.msra.mxu0 %v776
    %795 = vmatprep.subr.mxu0 0.0
    %796 = vmatpush1.msra.mxu0 %v777
    %797 = vmatprep.subr.mxu0 0.0
    %798 = vmatpush1.msra.mxu0 %v778
    %799 = vmatprep.subr.mxu0 0.0
    %800 = vmatpush1.msra.mxu0 %v779
    %801 = vmatprep.subr.mxu0 0.0
    %802 = vmatpush1.msra.mxu0 %v780
    %803 = vmatprep.subr.mxu0 0.0
    %804 = vmatpush1.msra.mxu0 %v781
    %805 = vmatprep.subr.mxu0 0.0
    %806 = vmatpush1.msra.mxu0 0.0
    %807 = vmatprep.subr.mxu0 0.0
    %808 = vmatpush1.msra.mxu0 0.0
    %809 = vmatprep.subr.mxu0 0.0
    %810 = vmatpush1.msra.mxu0 0.0
    %811 = vmatprep.subr.mxu0 0.0
    %812 = vmatpush1.msra.mxu0 0.0
    %813 = vmatprep.subr.mxu0 0.0
    %814 = vmatpush1.msra.mxu0 0.0
    %815 = vmatprep.subr.mxu0 0.0
    %816 = vmatpush1.msra.mxu0 0.0
    %817 = vmatprep.subr.mxu0 0.0
    %818 = vmatpush1.msra.mxu0 0.0
    %819 = vmatprep.subr.mxu0 0.0
    %820 = vmatpush1.msra.mxu0 0.0
    %821 = vmatprep.subr.mxu0 0.0
    %822 = vmatpush1.msra.mxu0 0.0
    %823 = vmatprep.subr.mxu0 0.0
    %824 = vmatpush1.msra.mxu0 0.0
    %825 = vmatprep.subr.mxu0 0.0
    %826 = vmatpush1.msra.mxu0 0.0
    %827 = vmatprep.subr.mxu0 0.0
    %828 = vmatpush1.msra.mxu0 0.0
    %829 = vmatprep.subr.mxu0 0.0
    %830 = vmatpush1.msra.mxu0 0.0
    %831 = vmatprep.subr.mxu0 0.0
    %832 = vmatpush1.msra.mxu0 0.0
    %833 = vmatprep.subr.mxu0 0.0
    %834 = vmatpush1.msra.mxu0 0.0
    %835 = vmatprep.subr.mxu0 0.0
    %836 = vmatpush1.msra.mxu0 0.0
    %837 = vmatprep.subr.mxu0 0.0
    %838 = vmatpush1.msra.mxu0 0.0
    %839 = vmatprep.subr.mxu0 0.0
    %840 = vmatpush1.msra.mxu0 0.0
    %841 = vmatprep.subr.mxu0 0.0
    %842 = vmatpush1.msra.mxu0 0.0
    %843 = vmatprep.subr.mxu0 0.0
    %844 = vmatpush1.msra.mxu0 0.0
    %845 = vmatprep.subr.mxu0 0.0
    %846 = vmatpush1.msra.mxu0 0.0
    %847 = vmatprep.subr.mxu0 0.0
    %848 = vmatpush1.msra.mxu0 0.0
    %849 = vmatprep.subr.mxu0 0.0
    %850 = vmatpush1.msra.mxu0 0.0
    %851 = vmatprep.subr.mxu0 0.0
    %852 = vmatpush1.msra.mxu0 0.0
    %853 = vmatprep.mubr.f32.mxu0 0.0
    %854 = vmatmul.mubr.f32.gmra.mrb[0].mxu0 %v784
    %v855 = vpop.f32.mrb[0].mxu0
    %v856 = vadd.f32 0.0, %v855
    %v857 = vpop.f32.mrb[0].mxu0
    %858 = vmatprep.mubr.f32.mxu0 0.0
    %859 = vmatmul.mubr.f32.gmra.mrb[0].mxu0 %v787
    %v860 = vpop.f32.mrb[0].mxu0
    %v861 = vadd.f32 0.0, %v860
    %v862 = vpop.f32.mrb[0].mxu0
    %863 = vdwg.mxu0
    %v864 = vlaneseq
    %v865 = vshrl.u32 %v864, 7
    %v866 = vsub.s32 1, %v865
    %v867 = vrot.slane %v187, %v866
    %v869 = vsel %vm192, %v856, 0
    %v872 = vsel %vm192, %v861, 0
    %874 = vmatprep.subr.mxu0 0.0
    %875 = vmatpush1.msra.mxu0 %v171
    %876 = vmatprep.subr.mxu0 0.0
    %877 = vmatpush1.msra.mxu0 %v172
    %878 = vmatprep.subr.mxu0 0.0
    %879 = vmatpush1.msra.mxu0 %v173
    %880 = vmatprep.subr.mxu0 0.0
    %881 = vmatpush1.msra.mxu0 %v174
    %882 = vmatprep.subr.mxu0 0.0
    %883 = vmatpush1.msra.mxu0 0.0
    %884 = vmatprep.subr.mxu0 0.0
    %885 = vmatpush1.msra.mxu0 0.0
    %886 = vmatprep.subr.mxu0 0.0
    %887 = vmatpush1.msra.mxu0 0.0
    %888 = vmatprep.subr.mxu0 0.0
    %889 = vmatpush1.msra.mxu0 0.0
    %890 = vmatprep.subr.mxu0 0.0
    %891 = vmatpush1.msra.mxu0 0.0
    %892 = vmatprep.subr.mxu0 0.0
    %893 = vmatpush1.msra.mxu0 0.0
    %894 = vmatprep.subr.mxu0 0.0
    %895 = vmatpush1.msra.mxu0 0.0
    %896 = vmatprep.subr.mxu0 0.0
    %897 = vmatpush1.msra.mxu0 0.0
    %898 = vmatprep.subr.mxu0 0.0
    %899 = vmatpush1.msra.mxu0 0.0
    %900 = vmatprep.subr.mxu0 0.0
    %901 = vmatpush1.msra.mxu0 0.0
    %902 = vmatprep.subr.mxu0 0.0
    %903 = vmatpush1.msra.mxu0 0.0
    %904 = vmatprep.subr.mxu0 0.0
    %905 = vmatpush1.msra.mxu0 0.0
    %906 = vmatprep.subr.mxu0 0.0
    %907 = vmatpush1.msra.mxu0 0.0
    %908 = vmatprep.subr.mxu0 0.0
    %909 = vmatpush1.msra.mxu0 0.0
    %910 = vmatprep.subr.mxu0 0.0
    %911 = vmatpush1.msra.mxu0 0.0
    %912 = vmatprep.subr.mxu0 0.0
    %913 = vmatpush1.msra.mxu0 0.0
    %914 = vmatprep.subr.mxu0 0.0
    %915 = vmatpush1.msra.mxu0 0.0
    %916 = vmatprep.subr.mxu0 0.0
    %917 = vmatpush1.msra.mxu0 0.0
    %918 = vmatprep.subr.mxu0 0.0
    %919 = vmatpush1.msra.mxu0 0.0
    %920 = vmatprep.subr.mxu0 0.0
    %921 = vmatpush1.msra.mxu0 0.0
    %922 = vmatprep.subr.mxu0 0.0
    %923 = vmatpush1.msra.mxu0 0.0
    %924 = vmatprep.subr.mxu0 0.0
    %925 = vmatpush1.msra.mxu0 0.0
    %926 = vmatprep.subr.mxu0 0.0
    %927 = vmatpush1.msra.mxu0 0.0
    %928 = vmatprep.subr.mxu0 0.0
    %929 = vmatpush1.msra.mxu0 0.0
    %930 = vmatprep.subr.mxu0 0.0
    %931 = vmatpush1.msra.mxu0 0.0
    %932 = vmatprep.subr.mxu0 0.0
    %933 = vmatpush1.msra.mxu0 0.0
    %934 = vmatprep.subr.mxu0 0.0
    %935 = vmatpush1.msra.mxu0 0.0
    %936 = vmatprep.subr.mxu0 0.0
    %937 = vmatpush1.msra.mxu0 0.0
    %938 = vmatprep.mubr.f32.mxu0 0.0
    %939 = vmatmul.mubr.f32.gmra.mrb[0].mxu0 %v869
    %v940 = vpop.f32.mrb[0].mxu0
    %v941 = vadd.f32 %v867, %v940
    %v942 = vpop.f32.mrb[0].mxu0
    %943 = vmatprep.mubr.f32.mxu0 0.0
    %944 = vmatmul.mubr.f32.gmra.mrb[0].mxu0 %v872
    %v945 = vpop.f32.mrb[0].mxu0
    %v946 = vadd.f32 %v867, %v945
    %v947 = vpop.f32.mrb[0].mxu0
    %948 = vdwg.mxu0
    %v949 = vadd.f32 %v159, %v941
    %v950 = vadd.f32 %v164, %v946
    %v951 = vsel %vm192, %v949, 0.0
    %952 = vadd.xlane.f32.xlu0 %v951
    %v953 = vpop.xlane.xlu0 %952
    %v954 = vsel %vm192, %v950, 0.0
    %955 = vadd.xlane.f32.xlu0 %v954
    %v956 = vpop.xlane.xlu0 %955
    %v957 = vrcp.pop 32.0
    %v958 = vmul.f32 %v953, %v957
    %v959 = vmul.f32 %v956, %v957
    %v960 = vsub.f32 %v949, %v958
    %v961 = vsub.f32 %v950, %v959
    %v962 = vmul.f32 %v960, %v960
    %v963 = vmul.f32 %v961, %v961
    %v964 = vsel %vm192, %v962, 0.0
    %965 = vadd.xlane.f32.xlu0 %v964
    %v966 = vpop.xlane.xlu0 %965
    %v967 = vsel %vm192, %v963, 0.0
    %968 = vadd.xlane.f32.xlu0 %v967
    %v969 = vpop.xlane.xlu0 %968
    %v970 = vmul.f32 %v966, %v957
    %v971 = vmul.f32 %v969, %v957
    %v972 = vadd.f32 %v970, 1e-05
    %v973 = vadd.f32 %v971, 1e-05
    %v974 = vrsqrt.pop %v972
    %v975 = vrsqrt.pop %v973
    %v976 = vmul.f32 %v960, %v974
    %v977 = vmul.f32 %v961, %v975
    %v978 = vlaneseq
    %v979 = vshrl.u32 %v978, 7
    %v980 = vsub.s32 4, %v979
    %v981 = vrot.slane %v187, %v980
    %v982 = vmul.f32 %v976, %v981
    %v983 = vmul.f32 %v977, %v981
    %v984 = vlaneseq
    %v985 = vshrl.u32 %v984, 7
    %v986 = vsub.s32 5, %v985
    %v987 = vrot.slane %v187, %v986
    %v988 = vadd.f32 %v982, %v987
    %v989 = vadd.f32 %v983, %v987
    %v990 = vlaneseq
    %v991 = vshrl.u32 %v990, 7
    %v992 = vsub.s32 2, %v991
    %v993 = vrot.slane %v187, %v992
    %v995 = vsel %vm192, %v988, 0
    %v998 = vsel %vm192, %v989, 0
    %1000 = vmatprep.subr.mxu0 0.0
    %1001 = vmatpush1.msra.mxu0 %v175
    %1002 = vmatprep.subr.mxu0 0.0
    %1003 = vmatpush1.msra.mxu0 %v176
    %1004 = vmatprep.subr.mxu0 0.0
    %1005 = vmatpush1.msra.mxu0 %v177
    %1006 = vmatprep.subr.mxu0 0.0
    %1007 = vmatpush1.msra.mxu0 %v178
    %1008 = vmatprep.subr.mxu0 0.0
    %1009 = vmatpush1.msra.mxu0 0.0
    %1010 = vmatprep.subr.mxu0 0.0
    %1011 = vmatpush1.msra.mxu0 0.0
    %1012 = vmatprep.subr.mxu0 0.0
    %1013 = vmatpush1.msra.mxu0 0.0
    %1014 = vmatprep.subr.mxu0 0.0
    %1015 = vmatpush1.msra.mxu0 0.0
    %1016 = vmatprep.subr.mxu0 0.0
    %1017 = vmatpush1.msra.mxu0 0.0
    %1018 = vmatprep.subr.mxu0 0.0
    %1019 = vmatpush1.msra.mxu0 0.0
    %1020 = vmatprep.subr.mxu0 0.0
    %1021 = vmatpush1.msra.mxu0 0.0
    %1022 = vmatprep.subr.mxu0 0.0
    %1023 = vmatpush1.msra.mxu0 0.0
    %1024 = vmatprep.subr.mxu0 0.0
    %1025 = vmatpush1.msra.mxu0 0.0
    %1026 = vmatprep.subr.mxu0 0.0
    %1027 = vmatpush1.msra.mxu0 0.0
    %1028 = vmatprep.subr.mxu0 0.0
    %1029 = vmatpush1.msra.mxu0 0.0
    %1030 = vmatprep.subr.mxu0 0.0
    %1031 = vmatpush1.msra.mxu0 0.0
    %1032 = vmatprep.subr.mxu0 0.0
    %1033 = vmatpush1.msra.mxu0 0.0
    %1034 = vmatprep.subr.mxu0 0.0
    %1035 = vmatpush1.msra.mxu0 0.0
    %1036 = vmatprep.subr.mxu0 0.0
    %1037 = vmatpush1.msra.mxu0 0.0
    %1038 = vmatprep.subr.mxu0 0.0
    %1039 = vmatpush1.msra.mxu0 0.0
    %1040 = vmatprep.subr.mxu0 0.0
    %1041 = vmatpush1.msra.mxu0 0.0
    %1042 = vmatprep.subr.mxu0 0.0
    %1043 = vmatpush1.msra.mxu0 0.0
    %1044 = vmatprep.subr.mxu0 0.0
    %1045 = vmatpush1.msra.mxu0 0.0
    %1046 = vmatprep.subr.mxu0 0.0
    %1047 = vmatpush1.msra.mxu0 0.0
    %1048 = vmatprep.subr.mxu0 0.0
    %1049 = vmatpush1.msra.mxu0 0.0
    %1050 = vmatprep.subr.mxu0 0.0
    %1051 = vmatpush1.msra.mxu0 0.0
    %1052 = vmatprep.subr.mxu0 0.0
    %1053 = vmatpush1.msra.mxu0 0.0
    %1054 = vmatprep.subr.mxu0 0.0
    %1055 = vmatpush1.msra.mxu0 0.0
    %1056 = vmatprep.subr.mxu0 0.0
    %1057 = vmatpush1.msra.mxu0 0.0
    %1058 = vmatprep.subr.mxu0 0.0
    %1059 = vmatpush1.msra.mxu0 0.0
    %1060 = vmatprep.subr.mxu0 0.0
    %1061 = vmatpush1.msra.mxu0 0.0
    %1062 = vmatprep.subr.mxu0 0.0
    %1063 = vmatpush1.msra.mxu0 0.0
    %1064 = vmatprep.mubr.f32.mxu0 0.0
    %1065 = vmatmul.mubr.f32.gmra.mrb[0].mxu0 %v995
    %v1066 = vpop.f32.mrb[0].mxu0
    %v1067 = vadd.f32 %v993, %v1066
    %v1068 = vpop.f32.mrb[0].mxu0
    %1069 = vmatprep.mubr.f32.mxu0 0.0
    %1070 = vmatmul.mubr.f32.gmra.mrb[0].mxu0 %v998
    %v1071 = vpop.f32.mrb[0].mxu0
    %v1072 = vadd.f32 %v993, %v1071
    %v1073 = vpop.f32.mrb[0].mxu0
    %1074 = vdwg.mxu0
    %v1075 = vmax.f32 %v1067, 0.0
    %v1076 = vmax.f32 %v1072, 0.0
    %v1077 = vlaneseq
    %v1078 = vshrl.u32 %v1077, 7
    %v1079 = vsub.s32 3, %v1078
    %v1080 = vrot.slane %v187, %v1079
    %v1082 = vsel %vm782, %v1075, 0
    %v1085 = vsel %vm782, %v1076, 0
    %1087 = vmatprep.subr.mxu0 0.0
    %1088 = vmatpush1.msra.mxu0 %v179
    %1089 = vmatprep.subr.mxu0 0.0
    %1090 = vmatpush1.msra.mxu0 %v180
    %1091 = vmatprep.subr.mxu0 0.0
    %1092 = vmatpush1.msra.mxu0 %v181
    %1093 = vmatprep.subr.mxu0 0.0
    %1094 = vmatpush1.msra.mxu0 %v182
    %1095 = vmatprep.subr.mxu0 0.0
    %1096 = vmatpush1.msra.mxu0 %v183
    %1097 = vmatprep.subr.mxu0 0.0
    %1098 = vmatpush1.msra.mxu0 %v184
    %1099 = vmatprep.subr.mxu0 0.0
    %1100 = vmatpush1.msra.mxu0 %v185
    %1101 = vmatprep.subr.mxu0 0.0
    %1102 = vmatpush1.msra.mxu0 %v186
    %1103 = vmatprep.subr.mxu0 0.0
    %1104 = vmatpush1.msra.mxu0 0.0
    %1105 = vmatprep.subr.mxu0 0.0
    %1106 = vmatpush1.msra.mxu0 0.0
    %1107 = vmatprep.subr.mxu0 0.0
    %1108 = vmatpush1.msra.mxu0 0.0
    %1109 = vmatprep.subr.mxu0 0.0
    %1110 = vmatpush1.msra.mxu0 0.0
    %1111 = vmatprep.subr.mxu0 0.0
    %1112 = vmatpush1.msra.mxu0 0.0
    %1113 = vmatprep.subr.mxu0 0.0
    %1114 = vmatpush1.msra.mxu0 0.0
    %1115 = vmatprep.subr.mxu0 0.0
    %1116 = vmatpush1.msra.mxu0 0.0
    %1117 = vmatprep.subr.mxu0 0.0
    %1118 = vmatpush1.msra.mxu0 0.0
    %1119 = vmatprep.subr.mxu0 0.0
    %1120 = vmatpush1.msra.mxu0 0.0
    %1121 = vmatprep.subr.mxu0 0.0
    %1122 = vmatpush1.msra.mxu0 0.0
    %1123 = vmatprep.subr.mxu0 0.0
    %1124 = vmatpush1.msra.mxu0 0.0
    %1125 = vmatprep.subr.mxu0 0.0
    %1126 = vmatpush1.msra.mxu0 0.0
    %1127 = vmatprep.subr.mxu0 0.0
    %1128 = vmatpush1.msra.mxu0 0.0
    %1129 = vmatprep.subr.mxu0 0.0
    %1130 = vmatpush1.msra.mxu0 0.0
    %1131 = vmatprep.subr.mxu0 0.0
    %1132 = vmatpush1.msra.mxu0 0.0
    %1133 = vmatprep.subr.mxu0 0.0
    %1134 = vmatpush1.msra.mxu0 0.0
    %1135 = vmatprep.subr.mxu0 0.0
    %1136 = vmatpush1.msra.mxu0 0.0
    %1137 = vmatprep.subr.mxu0 0.0
    %1138 = vmatpush1.msra.mxu0 0.0
    %1139 = vmatprep.subr.mxu0 0.0
    %1140 = vmatpush1.msra.mxu0 0.0
    %1141 = vmatprep.subr.mxu0 0.0
    %1142 = vmatpush1.msra.mxu0 0.0
    %1143 = vmatprep.subr.mxu0 0.0
    %1144 = vmatpush1.msra.mxu0 0.0
    %1145 = vmatprep.subr.mxu0 0.0
    %1146 = vmatpush1.msra.mxu0 0.0
    %1147 = vmatprep.subr.mxu0 0.0
    %1148 = vmatpush1.msra.mxu0 0.0
    %1149 = vmatprep.subr.mxu0 0.0
    %1150 = vmatpush1.msra.mxu0 0.0
    %1151 = vmatprep.mubr.f32.mxu0 0.0
    %1152 = vmatmul.mubr.f32.gmra.mrb[0].mxu0 %v1082
    %v1153 = vpop.f32.mrb[0].mxu0
    %v1154 = vadd.f32 %v1080, %v1153
    %v1155 = vpop.f32.mrb[0].mxu0
    %1156 = vmatprep.mubr.f32.mxu0 0.0
    %1157 = vmatmul.mubr.f32.gmra.mrb[0].mxu0 %v1085
    %v1158 = vpop.f32.mrb[0].mxu0
    %v1159 = vadd.f32 %v1080, %v1158
    %v1160 = vpop.f32.mrb[0].mxu0
    %1161 = vdwg.mxu0
    %v1162 = vadd.f32 %v988, %v1154
    %v1163 = vadd.f32 %v989, %v1159
    %v1164 = vsel %vm192, %v1162, 0.0
    %1165 = vadd.xlane.f32.xlu0 %v1164
    %v1166 = vpop.xlane.xlu0 %1165
    %v1167 = vsel %vm192, %v1163, 0.0
    %1168 = vadd.xlane.f32.xlu0 %v1167
    %v1169 = vpop.xlane.xlu0 %1168
    %v1170 = vmul.f32 %v1166, %v957
    %v1171 = vmul.f32 %v1169, %v957
    %v1172 = vsub.f32 %v1162, %v1170
    %v1173 = vsub.f32 %v1163, %v1171
    %v1174 = vmul.f32 %v1172, %v1172
    %v1175 = vmul.f32 %v1173, %v1173
    %v1176 = vsel %vm192, %v1174, 0.0
    %1177 = vadd.xlane.f32.xlu0 %v1176
    %v1178 = vpop.xlane.xlu0 %1177
    %v1179 = vsel %vm192, %v1175, 0.0
    %1180 = vadd.xlane.f32.xlu0 %v1179
    %v1181 = vpop.xlane.xlu0 %1180
    %v1182 = vmul.f32 %v1178, %v957
    %v1183 = vmul.f32 %v1181, %v957
    %v1184 = vadd.f32 %v1182, 1e-05
    %v1185 = vadd.f32 %v1183, 1e-05
    %v1186 = vrsqrt.pop %v1184
    %v1187 = vrsqrt.pop %v1185
    %v1188 = vmul.f32 %v1172, %v1186
    %v1189 = vmul.f32 %v1173, %v1187
    %v1190 = vlaneseq
    %v1191 = vshrl.u32 %v1190, 7
    %v1192 = vsub.s32 6, %v1191
    %v1193 = vrot.slane %v187, %v1192
    %v1194 = vmul.f32 %v1188, %v1193
    %v1195 = vmul.f32 %v1189, %v1193
    %v1196 = vlaneseq
    %v1197 = vshrl.u32 %v1196, 7
    %v1198 = vsub.s32 7, %v1197
    %v1199 = vrot.slane %v187, %v1198
    %v1200 = vadd.f32 %v1194, %v1199
    %v1201 = vadd.f32 %v1195, %v1199
    %s1202 = scalar_lea.vmem %s4, 168
    %v1203 = vld [vmem:[%s1202] sm:$0xff]
    %v1204 = vld [vmem:[%s1202 + $0x8] sm:$0xff]
    %v1205 = vld [vmem:[%s1202 + $0x10] sm:$0xff]
    %v1206 = vld [vmem:[%s1202 + $0x18] sm:$0xff]
    %v1207 = vld [vmem:[%s1202 + $0x20] sm:$0xff]
    %v1208 = vld [vmem:[%s1202 + $0x28] sm:$0xff]
    %v1209 = vld [vmem:[%s1202 + $0x30] sm:$0xff]
    %v1210 = vld [vmem:[%s1202 + $0x38] sm:$0xff]
    %v1211 = vld [vmem:[%s1202 + $0x40] sm:$0xff]
    %v1212 = vld [vmem:[%s1202 + $0x48] sm:$0xff]
    %v1213 = vld [vmem:[%s1202 + $0x50] sm:$0xff]
    %v1214 = vld [vmem:[%s1202 + $0x58] sm:$0xff]
    %v1215 = vld [vmem:[%s1202 + $0x60] sm:$0xff]
    %v1216 = vld [vmem:[%s1202 + $0x68] sm:$0xff]
    %v1217 = vld [vmem:[%s1202 + $0x70] sm:$0xff]
    %v1218 = vld [vmem:[%s1202 + $0x78] sm:$0xff]
    %v1219 = vld [vmem:[%s1202 + $0x80] sm:$0xff]
    %v1220 = vld [vmem:[%s1202 + $0x88] sm:$0xff]
    %v1221 = vld [vmem:[%s1202 + $0x90] sm:$0xff]
    %v1222 = vld [vmem:[%s1202 + $0x98] sm:$0xff]
    %v1223 = vld [vmem:[%s1202 + $0xa0] sm:$0xff]
    %v1224 = vlaneseq
    %v1225 = vshrl.u32 %v1224, 7
    %v1226 = vsub.s32 0, %v1225
    %v1227 = vrot.slane %v1223, %v1226
    %v1229 = vsel %vm192, %v1200, 0
    %v1232 = vsel %vm192, %v1201, 0
    %1234 = vmatprep.subr.mxu0 0.0
    %1235 = vmatpush1.msra.mxu0 %v1203
    %1236 = vmatprep.subr.mxu0 0.0
    %1237 = vmatpush1.msra.mxu0 %v1204
    %1238 = vmatprep.subr.mxu0 0.0
    %1239 = vmatpush1.msra.mxu0 %v1205
    %1240 = vmatprep.subr.mxu0 0.0
    %1241 = vmatpush1.msra.mxu0 %v1206
    %1242 = vmatprep.subr.mxu0 0.0
    %1243 = vmatpush1.msra.mxu0 0.0
    %1244 = vmatprep.subr.mxu0 0.0
    %1245 = vmatpush1.msra.mxu0 0.0
    %1246 = vmatprep.subr.mxu0 0.0
    %1247 = vmatpush1.msra.mxu0 0.0
    %1248 = vmatprep.subr.mxu0 0.0
    %1249 = vmatpush1.msra.mxu0 0.0
    %1250 = vmatprep.subr.mxu0 0.0
    %1251 = vmatpush1.msra.mxu0 0.0
    %1252 = vmatprep.subr.mxu0 0.0
    %1253 = vmatpush1.msra.mxu0 0.0
    %1254 = vmatprep.subr.mxu0 0.0
    %1255 = vmatpush1.msra.mxu0 0.0
    %1256 = vmatprep.subr.mxu0 0.0
    %1257 = vmatpush1.msra.mxu0 0.0
    %1258 = vmatprep.subr.mxu0 0.0
    %1259 = vmatpush1.msra.mxu0 0.0
    %1260 = vmatprep.subr.mxu0 0.0
    %1261 = vmatpush1.msra.mxu0 0.0
    %1262 = vmatprep.subr.mxu0 0.0
    %1263 = vmatpush1.msra.mxu0 0.0
    %1264 = vmatprep.subr.mxu0 0.0
    %1265 = vmatpush1.msra.mxu0 0.0
    %1266 = vmatprep.subr.mxu0 0.0
    %1267 = vmatpush1.msra.mxu0 0.0
    %1268 = vmatprep.subr.mxu0 0.0
    %1269 = vmatpush1.msra.mxu0 0.0
    %1270 = vmatprep.subr.mxu0 0.0
    %1271 = vmatpush1.msra.mxu0 0.0
    %1272 = vmatprep.subr.mxu0 0.0
    %1273 = vmatpush1.msra.mxu0 0.0
    %1274 = vmatprep.subr.mxu0 0.0
    %1275 = vmatpush1.msra.mxu0 0.0
    %1276 = vmatprep.subr.mxu0 0.0
    %1277 = vmatpush1.msra.mxu0 0.0
    %1278 = vmatprep.subr.mxu0 0.0
    %1279 = vmatpush1.msra.mxu0 0.0
    %1280 = vmatprep.subr.mxu0 0.0
    %1281 = vmatpush1.msra.mxu0 0.0
    %1282 = vmatprep.subr.mxu0 0.0
    %1283 = vmatpush1.msra.mxu0 0.0
    %1284 = vmatprep.subr.mxu0 0.0
    %1285 = vmatpush1.msra.mxu0 0.0
    %1286 = vmatprep.subr.mxu0 0.0
    %1287 = vmatpush1.msra.mxu0 0.0
    %1288 = vmatprep.subr.mxu0 0.0
    %1289 = vmatpush1.msra.mxu0 0.0
    %1290 = vmatprep.subr.mxu0 0.0
    %1291 = vmatpush1.msra.mxu0 0.0
    %1292 = vmatprep.subr.mxu0 0.0
    %1293 = vmatpush1.msra.mxu0 0.0
    %1294 = vmatprep.subr.mxu0 0.0
    %1295 = vmatpush1.msra.mxu0 0.0
    %1296 = vmatprep.subr.mxu0 0.0
    %1297 = vmatpush1.msra.mxu0 0.0
    %1298 = vmatprep.mubr.f32.mxu0 0.0
    %1299 = vmatmul.mubr.f32.gmra.mrb[0].mxu0 %v1229
    %v1300 = vpop.f32.mrb[0].mxu0
    %v1301 = vadd.f32 %v1227, %v1300
    %v1302 = vpop.f32.mrb[0].mxu0
    %1303 = vmatprep.mubr.f32.mxu0 0.0
    %1304 = vmatmul.mubr.f32.gmra.mrb[0].mxu0 %v1232
    %v1305 = vpop.f32.mrb[0].mxu0
    %v1306 = vadd.f32 %v1227, %v1305
    %v1307 = vpop.f32.mrb[0].mxu0
    %1308 = vdwg.mxu0
    %1309 = vmatprep.subr.mxu0 0.0
    %1310 = vmatpush1.msra.mxu0 %v1301
    %1311 = vmatprep.subr.mxu0 0.0
    %1312 = vmatpush1.msra.mxu0 %v1306
    %1313 = vmatprep.subr.mxu0 0.0
    %1314 = vmatpush1.msra.mxu0 0.0
    %1315 = vmatprep.subr.mxu0 0.0
    %1316 = vmatpush1.msra.mxu0 0.0
    %1317 = vmatprep.subr.mxu0 0.0
    %1318 = vmatpush1.msra.mxu0 0.0
    %1319 = vmatprep.subr.mxu0 0.0
    %1320 = vmatpush1.msra.mxu0 0.0
    %1321 = vmatprep.subr.mxu0 0.0
    %1322 = vmatpush1.msra.mxu0 0.0
    %1323 = vmatprep.subr.mxu0 0.0
    %1324 = vmatpush1.msra.mxu0 0.0
    %1325 = vmatprep.subr.mxu0 0.0
    %1326 = vmatpush1.msra.mxu0 0.0
    %1327 = vmatprep.subr.mxu0 0.0
    %1328 = vmatpush1.msra.mxu0 0.0
    %1329 = vmatprep.subr.mxu0 0.0
    %1330 = vmatpush1.msra.mxu0 0.0
    %1331 = vmatprep.subr.mxu0 0.0
    %1332 = vmatpush1.msra.mxu0 0.0
    %1333 = vmatprep.subr.mxu0 0.0
    %1334 = vmatpush1.msra.mxu0 0.0
    %1335 = vmatprep.subr.mxu0 0.0
    %1336 = vmatpush1.msra.mxu0 0.0
    %1337 = vmatprep.subr.mxu0 0.0
    %1338 = vmatpush1.msra.mxu0 0.0
    %1339 = vmatprep.subr.mxu0 0.0
    %1340 = vmatpush1.msra.mxu0 0.0
    %1341 = vmatprep.subr.mxu0 0.0
    %1342 = vmatpush1.msra.mxu0 0.0
    %1343 = vmatprep.subr.mxu0 0.0
    %1344 = vmatpush1.msra.mxu0 0.0
    %1345 = vmatprep.subr.mxu0 0.0
    %1346 = vmatpush1.msra.mxu0 0.0
    %1347 = vmatprep.subr.mxu0 0.0
    %1348 = vmatpush1.msra.mxu0 0.0
    %1349 = vmatprep.subr.mxu0 0.0
    %1350 = vmatpush1.msra.mxu0 0.0
    %1351 = vmatprep.subr.mxu0 0.0
    %1352 = vmatpush1.msra.mxu0 0.0
    %1353 = vmatprep.subr.mxu0 0.0
    %1354 = vmatpush1.msra.mxu0 0.0
    %1355 = vmatprep.subr.mxu0 0.0
    %1356 = vmatpush1.msra.mxu0 0.0
    %1357 = vmatprep.subr.mxu0 0.0
    %1358 = vmatpush1.msra.mxu0 0.0
    %1359 = vmatprep.subr.mxu0 0.0
    %1360 = vmatpush1.msra.mxu0 0.0
    %1361 = vmatprep.subr.mxu0 0.0
    %1362 = vmatpush1.msra.mxu0 0.0
    %1363 = vmatprep.subr.mxu0 0.0
    %1364 = vmatpush1.msra.mxu0 0.0
    %1365 = vmatprep.subr.mxu0 0.0
    %1366 = vmatpush1.msra.mxu0 0.0
    %1367 = vmatprep.subr.mxu0 0.0
    %1368 = vmatpush1.msra.mxu0 0.0
    %1369 = vmatprep.subr.mxu0 0.0
    %1370 = vmatpush1.msra.mxu0 0.0
    %1371 = vmatprep.subr.mxu0 0.0
    %1372 = vmatpush1.msra.mxu0 0.0
    %1373 = vmatprep.mubr.f32.mxu0 0.0
    %1374 = vmatmul.mubr.f32.gmra.mrb[0].mxu0 %v276
    %v1375 = vpop.f32.mrb[0].mxu0
    %v1376 = vadd.f32 0.0, %v1375
    %v1377 = vpop.f32.mrb[0].mxu0
    %1378 = vmatprep.mubr.f32.mxu0 0.0
    %1379 = vmatmul.mubr.f32.gmra.mrb[0].mxu0 %v279
    %v1380 = vpop.f32.mrb[0].mxu0
    %v1381 = vadd.f32 0.0, %v1380
    %v1382 = vpop.f32.mrb[0].mxu0
    %1383 = vmatprep.mubr.f32.mxu0 0.0
    %1384 = vmatmul.mubr.f32.gmra.mrb[0].mxu0 %v282
    %v1385 = vpop.f32.mrb[0].mxu0
    %v1386 = vadd.f32 0.0, %v1385
    %v1387 = vpop.f32.mrb[0].mxu0
    %1388 = vmatprep.mubr.f32.mxu0 0.0
    %1389 = vmatmul.mubr.f32.gmra.mrb[0].mxu0 %v285
    %v1390 = vpop.f32.mrb[0].mxu0
    %v1391 = vadd.f32 0.0, %v1390
    %v1392 = vpop.f32.mrb[0].mxu0
    %1393 = vmatprep.mubr.f32.mxu0 0.0
    %1394 = vmatmul.mubr.f32.gmra.mrb[0].mxu0 %v288
    %v1395 = vpop.f32.mrb[0].mxu0
    %v1396 = vadd.f32 0.0, %v1395
    %v1397 = vpop.f32.mrb[0].mxu0
    %1398 = vmatprep.mubr.f32.mxu0 0.0
    %1399 = vmatmul.mubr.f32.gmra.mrb[0].mxu0 %v291
    %v1400 = vpop.f32.mrb[0].mxu0
    %v1401 = vadd.f32 0.0, %v1400
    %v1402 = vpop.f32.mrb[0].mxu0
    %1403 = vmatprep.mubr.f32.mxu0 0.0
    %1404 = vmatmul.mubr.f32.gmra.mrb[0].mxu0 %v294
    %v1405 = vpop.f32.mrb[0].mxu0
    %v1406 = vadd.f32 0.0, %v1405
    %v1407 = vpop.f32.mrb[0].mxu0
    %1408 = vmatprep.mubr.f32.mxu0 0.0
    %1409 = vmatmul.mubr.f32.gmra.mrb[0].mxu0 %v297
    %v1410 = vpop.f32.mrb[0].mxu0
    %v1411 = vadd.f32 0.0, %v1410
    %v1412 = vpop.f32.mrb[0].mxu0
    %1413 = vdwg.mxu0
    %v1414 = vmul.f32 %v1376, %v32
    %v1415 = vmul.f32 %v1381, %v33
    %v1416 = vmul.f32 %v1386, %v34
    %v1417 = vmul.f32 %v1391, %v35
    %v1418 = vmul.f32 %v1396, %v36
    %v1419 = vmul.f32 %v1401, %v37
    %v1420 = vmul.f32 %v1406, %v38
    %v1421 = vmul.f32 %v1411, %v39
    %1424 = vrot.lane.b32.xlu0 %v1301, 96
    %v1425 = vpop.permute.xlu0 %1424
    %1426 = vrot.lane.b32.xlu0 %v1306, 96
    %v1427 = vpop.permute.xlu0 %1426
    %v1429 = vsel %vm192, %v1414, 0
    %v1432 = vsel %vm192, %v1415, 0
    %v1435 = vsel %vm192, %v1416, 0
    %v1438 = vsel %vm192, %v1417, 0
    %v1441 = vsel %vm192, %v1418, 0
    %v1444 = vsel %vm192, %v1419, 0
    %v1447 = vsel %vm192, %v1420, 0
    %v1450 = vsel %vm192, %v1421, 0
    %v1452 = vsel %vm192, %v1425, 0
    %v1454 = vsel %vm192, %v1427, 0
    %1456 = vmatprep.subr.mxu0 0.0
    %1457 = vmatpush1.xpose.msra.mxu0 %v1452
    %1458 = vmatprep.subr.mxu0 0.0
    %1459 = vmatpush1.xpose.msra.mxu0 %v1454
    %1460 = vmatprep.subr.mxu0 0.0
    %1461 = vmatpush1.xpose.msra.mxu0 0.0
    %1462 = vmatprep.subr.mxu0 0.0
    %1463 = vmatpush1.xpose.msra.mxu0 0.0
    %1464 = vmatprep.subr.mxu0 0.0
    %1465 = vmatpush1.xpose.msra.mxu0 0.0
    %1466 = vmatprep.subr.mxu0 0.0
    %1467 = vmatpush1.xpose.msra.mxu0 0.0
    %1468 = vmatprep.subr.mxu0 0.0
    %1469 = vmatpush1.xpose.msra.mxu0 0.0
    %1470 = vmatprep.subr.mxu0 0.0
    %1471 = vmatpush1.xpose.msra.mxu0 0.0
    %1472 = vmatprep.subr.mxu0 0.0
    %1473 = vmatpush1.xpose.msra.mxu0 0.0
    %1474 = vmatprep.subr.mxu0 0.0
    %1475 = vmatpush1.xpose.msra.mxu0 0.0
    %1476 = vmatprep.subr.mxu0 0.0
    %1477 = vmatpush1.xpose.msra.mxu0 0.0
    %1478 = vmatprep.subr.mxu0 0.0
    %1479 = vmatpush1.xpose.msra.mxu0 0.0
    %1480 = vmatprep.subr.mxu0 0.0
    %1481 = vmatpush1.xpose.msra.mxu0 0.0
    %1482 = vmatprep.subr.mxu0 0.0
    %1483 = vmatpush1.xpose.msra.mxu0 0.0
    %1484 = vmatprep.subr.mxu0 0.0
    %1485 = vmatpush1.xpose.msra.mxu0 0.0
    %1486 = vmatprep.subr.mxu0 0.0
    %1487 = vmatpush1.xpose.msra.mxu0 0.0
    %1488 = vmatprep.subr.mxu0 0.0
    %1489 = vmatpush1.xpose.msra.mxu0 0.0
    %1490 = vmatprep.subr.mxu0 0.0
    %1491 = vmatpush1.xpose.msra.mxu0 0.0
    %1492 = vmatprep.subr.mxu0 0.0
    %1493 = vmatpush1.xpose.msra.mxu0 0.0
    %1494 = vmatprep.subr.mxu0 0.0
    %1495 = vmatpush1.xpose.msra.mxu0 0.0
    %1496 = vmatprep.subr.mxu0 0.0
    %1497 = vmatpush1.xpose.msra.mxu0 0.0
    %1498 = vmatprep.subr.mxu0 0.0
    %1499 = vmatpush1.xpose.msra.mxu0 0.0
    %1500 = vmatprep.subr.mxu0 0.0
    %1501 = vmatpush1.xpose.msra.mxu0 0.0
    %1502 = vmatprep.subr.mxu0 0.0
    %1503 = vmatpush1.xpose.msra.mxu0 0.0
    %1504 = vmatprep.subr.mxu0 0.0
    %1505 = vmatpush1.xpose.msra.mxu0 0.0
    %1506 = vmatprep.subr.mxu0 0.0
    %1507 = vmatpush1.xpose.msra.mxu0 0.0
    %1508 = vmatprep.subr.mxu0 0.0
    %1509 = vmatpush1.xpose.msra.mxu0 0.0
    %1510 = vmatprep.subr.mxu0 0.0
    %1511 = vmatpush1.xpose.msra.mxu0 0.0
    %1512 = vmatprep.subr.mxu0 0.0
    %1513 = vmatpush1.xpose.msra.mxu0 0.0
    %1514 = vmatprep.subr.mxu0 0.0
    %1515 = vmatpush1.xpose.msra.mxu0 0.0
    %1516 = vmatprep.subr.mxu0 0.0
    %1517 = vmatpush1.xpose.msra.mxu0 0.0
    %1518 = vmatprep.subr.mxu0 0.0
    %1519 = vmatpush1.xpose.msra.mxu0 0.0
    %1520 = vmatprep.mubr.f32.mxu0 0.0
    %1521 = vmatmul.mubr.f32.gmra.mrb[0].mxu0 %v1429
    %v1522 = vpop.f32.mrb[0].mxu0
    %v1523 = vadd.f32 %v42, %v1522
    %v1524 = vpop.f32.mrb[0].mxu0
    %1525 = vmatprep.mubr.f32.mxu0 0.0
    %1526 = vmatmul.mubr.f32.gmra.mrb[0].mxu0 %v1432
    %v1527 = vpop.f32.mrb[0].mxu0
    %v1528 = vadd.f32 %v43, %v1527
    %v1529 = vpop.f32.mrb[0].mxu0
    %1530 = vmatprep.mubr.f32.mxu0 0.0
    %1531 = vmatmul.mubr.f32.gmra.mrb[0].mxu0 %v1435
    %v1532 = vpop.f32.mrb[0].mxu0
    %v1533 = vadd.f32 %v44, %v1532
    %v1534 = vpop.f32.mrb[0].mxu0
    %1535 = vmatprep.mubr.f32.mxu0 0.0
    %1536 = vmatmul.mubr.f32.gmra.mrb[0].mxu0 %v1438
    %v1537 = vpop.f32.mrb[0].mxu0
    %v1538 = vadd.f32 %v45, %v1537
    %v1539 = vpop.f32.mrb[0].mxu0
    %1540 = vmatprep.mubr.f32.mxu0 0.0
    %1541 = vmatmul.mubr.f32.gmra.mrb[0].mxu0 %v1441
    %v1542 = vpop.f32.mrb[0].mxu0
    %v1543 = vadd.f32 %v46, %v1542
    %v1544 = vpop.f32.mrb[0].mxu0
    %1545 = vmatprep.mubr.f32.mxu0 0.0
    %1546 = vmatmul.mubr.f32.gmra.mrb[0].mxu0 %v1444
    %v1547 = vpop.f32.mrb[0].mxu0
    %v1548 = vadd.f32 %v47, %v1547
    %v1549 = vpop.f32.mrb[0].mxu0
    %1550 = vmatprep.mubr.f32.mxu0 0.0
    %1551 = vmatmul.mubr.f32.gmra.mrb[0].mxu0 %v1447
    %v1552 = vpop.f32.mrb[0].mxu0
    %v1553 = vadd.f32 %v48, %v1552
    %v1554 = vpop.f32.mrb[0].mxu0
    %1555 = vmatprep.mubr.f32.mxu0 0.0
    %1556 = vmatmul.mubr.f32.gmra.mrb[0].mxu0 %v1450
    %v1557 = vpop.f32.mrb[0].mxu0
    %v1558 = vadd.f32 %v49, %v1557
    %v1559 = vpop.f32.mrb[0].mxu0
    %1560 = vdwg.mxu0
    %v1561 = vsel %vm274, %v1523, -inf
    %1562 = vmax.xlane.f32.xlu0 %v1561
    %v1563 = vpop.xlane.xlu0 %1562
    %v1564 = vsel %vm274, %v1528, -inf
    %1565 = vmax.xlane.f32.xlu0 %v1564
    %v1566 = vpop.xlane.xlu0 %1565
    %v1567 = vsel %vm274, %v1533, -inf
    %1568 = vmax.xlane.f32.xlu0 %v1567
    %v1569 = vpop.xlane.xlu0 %1568
    %v1570 = vsel %vm274, %v1538, -inf
    %1571 = vmax.xlane.f32.xlu0 %v1570
    %v1572 = vpop.xlane.xlu0 %1571
    %v1573 = vsel %vm274, %v1543, -inf
    %1574 = vmax.xlane.f32.xlu0 %v1573
    %v1575 = vpop.xlane.xlu0 %1574
    %v1576 = vsel %vm274, %v1548, -inf
    %1577 = vmax.xlane.f32.xlu0 %v1576
    %v1578 = vpop.xlane.xlu0 %1577
    %v1579 = vsel %vm274, %v1553, -inf
    %1580 = vmax.xlane.f32.xlu0 %v1579
    %v1581 = vpop.xlane.xlu0 %1580
    %v1582 = vsel %vm274, %v1558, -inf
    %1583 = vmax.xlane.f32.xlu0 %v1582
    %v1584 = vpop.xlane.xlu0 %1583
    %v1585 = vsub.f32 %v1523, %v1563
    %v1586 = vsub.f32 %v1528, %v1566
    %v1587 = vsub.f32 %v1533, %v1569
    %v1588 = vsub.f32 %v1538, %v1572
    %v1589 = vsub.f32 %v1543, %v1575
    %v1590 = vsub.f32 %v1548, %v1578
    %v1591 = vsub.f32 %v1553, %v1581
    %v1592 = vsub.f32 %v1558, %v1584
    %v1593 = vmul.f32 %v1585, 1.442695
    %v1594 = vpow.pop %v1593
    %v1595 = vmul.f32 %v1586, 1.442695
    %v1596 = vpow.pop %v1595
    %v1597 = vmul.f32 %v1587, 1.442695
    %v1598 = vpow.pop %v1597
    %v1599 = vmul.f32 %v1588, 1.442695
    %v1600 = vpow.pop %v1599
    %v1601 = vmul.f32 %v1589, 1.442695
    %v1602 = vpow.pop %v1601
    %v1603 = vmul.f32 %v1590, 1.442695
    %v1604 = vpow.pop %v1603
    %v1605 = vmul.f32 %v1591, 1.442695
    %v1606 = vpow.pop %v1605
    %v1607 = vmul.f32 %v1592, 1.442695
    %v1608 = vpow.pop %v1607
    %v1609 = vsel %vm274, %v1594, 0.0
    %1610 = vadd.xlane.f32.xlu0 %v1609
    %v1611 = vpop.xlane.xlu0 %1610
    %v1612 = vsel %vm274, %v1596, 0.0
    %1613 = vadd.xlane.f32.xlu0 %v1612
    %v1614 = vpop.xlane.xlu0 %1613
    %v1615 = vsel %vm274, %v1598, 0.0
    %1616 = vadd.xlane.f32.xlu0 %v1615
    %v1617 = vpop.xlane.xlu0 %1616
    %v1618 = vsel %vm274, %v1600, 0.0
    %1619 = vadd.xlane.f32.xlu0 %v1618
    %v1620 = vpop.xlane.xlu0 %1619
    %v1621 = vsel %vm274, %v1602, 0.0
    %1622 = vadd.xlane.f32.xlu0 %v1621
    %v1623 = vpop.xlane.xlu0 %1622
    %v1624 = vsel %vm274, %v1604, 0.0
    %1625 = vadd.xlane.f32.xlu0 %v1624
    %v1626 = vpop.xlane.xlu0 %1625
    %v1627 = vsel %vm274, %v1606, 0.0
    %1628 = vadd.xlane.f32.xlu0 %v1627
    %v1629 = vpop.xlane.xlu0 %1628
    %v1630 = vsel %vm274, %v1608, 0.0
    %1631 = vadd.xlane.f32.xlu0 %v1630
    %v1632 = vpop.xlane.xlu0 %1631
    %v1633 = vrcp.pop %v1611
    %v1634 = vrcp.pop %v1614
    %v1635 = vrcp.pop %v1617
    %v1636 = vrcp.pop %v1620
    %v1637 = vrcp.pop %v1623
    %v1638 = vrcp.pop %v1626
    %v1639 = vrcp.pop %v1629
    %v1640 = vrcp.pop %v1632
    %v1641 = vmul.f32 %v1594, %v1633
    %v1642 = vmul.f32 %v1596, %v1634
    %v1643 = vmul.f32 %v1598, %v1635
    %v1644 = vmul.f32 %v1600, %v1636
    %v1645 = vmul.f32 %v1602, %v1637
    %v1646 = vmul.f32 %v1604, %v1638
    %v1647 = vmul.f32 %v1606, %v1639
    %v1648 = vmul.f32 %v1608, %v1640
    %1649 = vrot.lane.b32.xlu0 %v1301, 64
    %v1650 = vpop.permute.xlu0 %1649
    %1651 = vrot.lane.b32.xlu0 %v1306, 64
    %v1652 = vpop.permute.xlu0 %1651
    %v1656 = vsel %vm274, %v1641, 0
    %v1659 = vsel %vm274, %v1642, 0
    %v1662 = vsel %vm274, %v1643, 0
    %v1665 = vsel %vm274, %v1644, 0
    %v1668 = vsel %vm274, %v1645, 0
    %v1671 = vsel %vm274, %v1646, 0
    %v1674 = vsel %vm274, %v1647, 0
    %v1677 = vsel %vm274, %v1648, 0
    %1679 = vmatprep.subr.mxu0 0.0
    %1680 = vmatpush1.msra.mxu0 %v1650
    %1681 = vmatprep.subr.mxu0 0.0
    %1682 = vmatpush1.msra.mxu0 %v1652
    %1683 = vmatprep.subr.mxu0 0.0
    %1684 = vmatpush1.msra.mxu0 0.0
    %1685 = vmatprep.subr.mxu0 0.0
    %1686 = vmatpush1.msra.mxu0 0.0
    %1687 = vmatprep.subr.mxu0 0.0
    %1688 = vmatpush1.msra.mxu0 0.0
    %1689 = vmatprep.subr.mxu0 0.0
    %1690 = vmatpush1.msra.mxu0 0.0
    %1691 = vmatprep.subr.mxu0 0.0
    %1692 = vmatpush1.msra.mxu0 0.0
    %1693 = vmatprep.subr.mxu0 0.0
    %1694 = vmatpush1.msra.mxu0 0.0
    %1695 = vmatprep.subr.mxu0 0.0
    %1696 = vmatpush1.msra.mxu0 0.0
    %1697 = vmatprep.subr.mxu0 0.0
    %1698 = vmatpush1.msra.mxu0 0.0
    %1699 = vmatprep.subr.mxu0 0.0
    %1700 = vmatpush1.msra.mxu0 0.0
    %1701 = vmatprep.subr.mxu0 0.0
    %1702 = vmatpush1.msra.mxu0 0.0
    %1703 = vmatprep.subr.mxu0 0.0
    %1704 = vmatpush1.msra.mxu0 0.0
    %1705 = vmatprep.subr.mxu0 0.0
    %1706 = vmatpush1.msra.mxu0 0.0
    %1707 = vmatprep.subr.mxu0 0.0
    %1708 = vmatpush1.msra.mxu0 0.0
    %1709 = vmatprep.subr.mxu0 0.0
    %1710 = vmatpush1.msra.mxu0 0.0
    %1711 = vmatprep.subr.mxu0 0.0
    %1712 = vmatpush1.msra.mxu0 0.0
    %1713 = vmatprep.subr.mxu0 0.0
    %1714 = vmatpush1.msra.mxu0 0.0
    %1715 = vmatprep.subr.mxu0 0.0
    %1716 = vmatpush1.msra.mxu0 0.0
    %1717 = vmatprep.subr.mxu0 0.0
    %1718 = vmatpush1.msra.mxu0 0.0
    %1719 = vmatprep.subr.mxu0 0.0
    %1720 = vmatpush1.msra.mxu0 0.0
    %1721 = vmatprep.subr.mxu0 0.0
    %1722 = vmatpush1.msra.mxu0 0.0
    %1723 = vmatprep.subr.mxu0 0.0
    %1724 = vmatpush1.msra.mxu0 0.0
    %1725 = vmatprep.subr.mxu0 0.0
    %1726 = vmatpush1.msra.mxu0 0.0
    %1727 = vmatprep.subr.mxu0 0.0
    %1728 = vmatpush1.msra.mxu0 0.0
    %1729 = vmatprep.subr.mxu0 0.0
    %1730 = vmatpush1.msra.mxu0 0.0
    %1731 = vmatprep.subr.mxu0 0.0
    %1732 = vmatpush1.msra.mxu0 0.0
    %1733 = vmatprep.subr.mxu0 0.0
    %1734 = vmatpush1.msra.mxu0 0.0
    %1735 = vmatprep.subr.mxu0 0.0
    %1736 = vmatpush1.msra.mxu0 0.0
    %1737 = vmatprep.subr.mxu0 0.0
    %1738 = vmatpush1.msra.mxu0 0.0
    %1739 = vmatprep.subr.mxu0 0.0
    %1740 = vmatpush1.msra.mxu0 0.0
    %1741 = vmatprep.subr.mxu0 0.0
    %1742 = vmatpush1.msra.mxu0 0.0
    %1743 = vmatprep.mubr.f32.mxu0 0.0
    %1744 = vmatmul.mubr.f32.gmra.mrb[0].mxu0 %v1656
    %v1745 = vpop.f32.mrb[0].mxu0
    %v1746 = vadd.f32 0.0, %v1745
    %v1747 = vpop.f32.mrb[0].mxu0
    %1748 = vmatprep.mubr.f32.mxu0 0.0
    %1749 = vmatmul.mubr.f32.gmra.mrb[0].mxu0 %v1659
    %v1750 = vpop.f32.mrb[0].mxu0
    %v1751 = vadd.f32 0.0, %v1750
    %v1752 = vpop.f32.mrb[0].mxu0
    %1753 = vmatprep.mubr.f32.mxu0 0.0
    %1754 = vmatmul.mubr.f32.gmra.mrb[0].mxu0 %v1662
    %v1755 = vpop.f32.mrb[0].mxu0
    %v1756 = vadd.f32 0.0, %v1755
    %v1757 = vpop.f32.mrb[0].mxu0
    %1758 = vmatprep.mubr.f32.mxu0 0.0
    %1759 = vmatmul.mubr.f32.gmra.mrb[0].mxu0 %v1665
    %v1760 = vpop.f32.mrb[0].mxu0
    %v1761 = vadd.f32 0.0, %v1760
    %v1762 = vpop.f32.mrb[0].mxu0
    %1763 = vmatprep.mubr.f32.mxu0 0.0
    %1764 = vmatmul.mubr.f32.gmra.mrb[0].mxu0 %v1668
    %v1765 = vpop.f32.mrb[0].mxu0
    %v1766 = vadd.f32 0.0, %v1765
    %v1767 = vpop.f32.mrb[0].mxu0
    %1768 = vmatprep.mubr.f32.mxu0 0.0
    %1769 = vmatmul.mubr.f32.gmra.mrb[0].mxu0 %v1671
    %v1770 = vpop.f32.mrb[0].mxu0
    %v1771 = vadd.f32 0.0, %v1770
    %v1772 = vpop.f32.mrb[0].mxu0
    %1773 = vmatprep.mubr.f32.mxu0 0.0
    %1774 = vmatmul.mubr.f32.gmra.mrb[0].mxu0 %v1674
    %v1775 = vpop.f32.mrb[0].mxu0
    %v1776 = vadd.f32 0.0, %v1775
    %v1777 = vpop.f32.mrb[0].mxu0
    %1778 = vmatprep.mubr.f32.mxu0 0.0
    %1779 = vmatmul.mubr.f32.gmra.mrb[0].mxu0 %v1677
    %v1780 = vpop.f32.mrb[0].mxu0
    %v1781 = vadd.f32 0.0, %v1780
    %v1782 = vpop.f32.mrb[0].mxu0
    %1783 = vdwg.mxu0
    %v1784 = vmul.f32 %v1746, %v32
    %v1785 = vmul.f32 %v1751, %v33
    %v1786 = vmul.f32 %v1756, %v34
    %v1787 = vmul.f32 %v1761, %v35
    %v1788 = vmul.f32 %v1766, %v36
    %v1789 = vmul.f32 %v1771, %v37
    %v1790 = vmul.f32 %v1776, %v38
    %v1791 = vmul.f32 %v1781, %v39
    %1792 = vmatprep.subr.mxu0 0.0
    %1793 = vmatpush1.msra.mxu0 %v1784
    %1794 = vmatprep.subr.mxu0 0.0
    %1795 = vmatpush1.msra.mxu0 %v1785
    %1796 = vmatprep.subr.mxu0 0.0
    %1797 = vmatpush1.msra.mxu0 %v1786
    %1798 = vmatprep.subr.mxu0 0.0
    %1799 = vmatpush1.msra.mxu0 %v1787
    %1800 = vmatprep.subr.mxu0 0.0
    %1801 = vmatpush1.msra.mxu0 %v1788
    %1802 = vmatprep.subr.mxu0 0.0
    %1803 = vmatpush1.msra.mxu0 %v1789
    %1804 = vmatprep.subr.mxu0 0.0
    %1805 = vmatpush1.msra.mxu0 %v1790
    %1806 = vmatprep.subr.mxu0 0.0
    %1807 = vmatpush1.msra.mxu0 %v1791
    %1808 = vmatprep.subr.mxu0 0.0
    %1809 = vmatpush1.msra.mxu0 0.0
    %1810 = vmatprep.subr.mxu0 0.0
    %1811 = vmatpush1.msra.mxu0 0.0
    %1812 = vmatprep.subr.mxu0 0.0
    %1813 = vmatpush1.msra.mxu0 0.0
    %1814 = vmatprep.subr.mxu0 0.0
    %1815 = vmatpush1.msra.mxu0 0.0
    %1816 = vmatprep.subr.mxu0 0.0
    %1817 = vmatpush1.msra.mxu0 0.0
    %1818 = vmatprep.subr.mxu0 0.0
    %1819 = vmatpush1.msra.mxu0 0.0
    %1820 = vmatprep.subr.mxu0 0.0
    %1821 = vmatpush1.msra.mxu0 0.0
    %1822 = vmatprep.subr.mxu0 0.0
    %1823 = vmatpush1.msra.mxu0 0.0
    %1824 = vmatprep.subr.mxu0 0.0
    %1825 = vmatpush1.msra.mxu0 0.0
    %1826 = vmatprep.subr.mxu0 0.0
    %1827 = vmatpush1.msra.mxu0 0.0
    %1828 = vmatprep.subr.mxu0 0.0
    %1829 = vmatpush1.msra.mxu0 0.0
    %1830 = vmatprep.subr.mxu0 0.0
    %1831 = vmatpush1.msra.mxu0 0.0
    %1832 = vmatprep.subr.mxu0 0.0
    %1833 = vmatpush1.msra.mxu0 0.0
    %1834 = vmatprep.subr.mxu0 0.0
    %1835 = vmatpush1.msra.mxu0 0.0
    %1836 = vmatprep.subr.mxu0 0.0
    %1837 = vmatpush1.msra.mxu0 0.0
    %1838 = vmatprep.subr.mxu0 0.0
    %1839 = vmatpush1.msra.mxu0 0.0
    %1840 = vmatprep.subr.mxu0 0.0
    %1841 = vmatpush1.msra.mxu0 0.0
    %1842 = vmatprep.subr.mxu0 0.0
    %1843 = vmatpush1.msra.mxu0 0.0
    %1844 = vmatprep.subr.mxu0 0.0
    %1845 = vmatpush1.msra.mxu0 0.0
    %1846 = vmatprep.subr.mxu0 0.0
    %1847 = vmatpush1.msra.mxu0 0.0
    %1848 = vmatprep.subr.mxu0 0.0
    %1849 = vmatpush1.msra.mxu0 0.0
    %1850 = vmatprep.subr.mxu0 0.0
    %1851 = vmatpush1.msra.mxu0 0.0
    %1852 = vmatprep.subr.mxu0 0.0
    %1853 = vmatpush1.msra.mxu0 0.0
    %1854 = vmatprep.subr.mxu0 0.0
    %1855 = vmatpush1.msra.mxu0 0.0
    %1856 = vmatprep.mubr.f32.mxu0 0.0
    %1857 = vmatmul.mubr.f32.gmra.mrb[0].mxu0 %v784
    %v1858 = vpop.f32.mrb[0].mxu0
    %v1859 = vadd.f32 0.0, %v1858
    %v1860 = vpop.f32.mrb[0].mxu0
    %1861 = vmatprep.mubr.f32.mxu0 0.0
    %1862 = vmatmul.mubr.f32.gmra.mrb[0].mxu0 %v787
    %v1863 = vpop.f32.mrb[0].mxu0
    %v1864 = vadd.f32 0.0, %v1863
    %v1865 = vpop.f32.mrb[0].mxu0
    %1866 = vdwg.mxu0
    %v1867 = vlaneseq
    %v1868 = vshrl.u32 %v1867, 7
    %v1869 = vsub.s32 1, %v1868
    %v1870 = vrot.slane %v1223, %v1869
    %v1872 = vsel %vm192, %v1859, 0
    %v1875 = vsel %vm192, %v1864, 0
    %1877 = vmatprep.subr.mxu0 0.0
    %1878 = vmatpush1.msra.mxu0 %v1207
    %1879 = vmatprep.subr.mxu0 0.0
    %1880 = vmatpush1.msra.mxu0 %v1208
    %1881 = vmatprep.subr.mxu0 0.0
    %1882 = vmatpush1.msra.mxu0 %v1209
    %1883 = vmatprep.subr.mxu0 0.0
    %1884 = vmatpush1.msra.mxu0 %v1210
    %1885 = vmatprep.subr.mxu0 0.0
    %1886 = vmatpush1.msra.mxu0 0.0
    %1887 = vmatprep.subr.mxu0 0.0
    %1888 = vmatpush1.msra.mxu0 0.0
    %1889 = vmatprep.subr.mxu0 0.0
    %1890 = vmatpush1.msra.mxu0 0.0
    %1891 = vmatprep.subr.mxu0 0.0
    %1892 = vmatpush1.msra.mxu0 0.0
    %1893 = vmatprep.subr.mxu0 0.0
    %1894 = vmatpush1.msra.mxu0 0.0
    %1895 = vmatprep.subr.mxu0 0.0
    %1896 = vmatpush1.msra.mxu0 0.0
    %1897 = vmatprep.subr.mxu0 0.0
    %1898 = vmatpush1.msra.mxu0 0.0
    %1899 = vmatprep.subr.mxu0 0.0
    %1900 = vmatpush1.msra.mxu0 0.0
    %1901 = vmatprep.subr.mxu0 0.0
    %1902 = vmatpush1.msra.mxu0 0.0
    %1903 = vmatprep.subr.mxu0 0.0
    %1904 = vmatpush1.msra.mxu0 0.0
    %1905 = vmatprep.subr.mxu0 0.0
    %1906 = vmatpush1.msra.mxu0 0.0
    %1907 = vmatprep.subr.mxu0 0.0
    %1908 = vmatpush1.msra.mxu0 0.0
    %1909 = vmatprep.subr.mxu0 0.0
    %1910 = vmatpush1.msra.mxu0 0.0
    %1911 = vmatprep.subr.mxu0 0.0
    %1912 = vmatpush1.msra.mxu0 0.0
    %1913 = vmatprep.subr.mxu0 0.0
    %1914 = vmatpush1.msra.mxu0 0.0
    %1915 = vmatprep.subr.mxu0 0.0
    %1916 = vmatpush1.msra.mxu0 0.0
    %1917 = vmatprep.subr.mxu0 0.0
    %1918 = vmatpush1.msra.mxu0 0.0
    %1919 = vmatprep.subr.mxu0 0.0
    %1920 = vmatpush1.msra.mxu0 0.0
    %1921 = vmatprep.subr.mxu0 0.0
    %1922 = vmatpush1.msra.mxu0 0.0
    %1923 = vmatprep.subr.mxu0 0.0
    %1924 = vmatpush1.msra.mxu0 0.0
    %1925 = vmatprep.subr.mxu0 0.0
    %1926 = vmatpush1.msra.mxu0 0.0
    %1927 = vmatprep.subr.mxu0 0.0
    %1928 = vmatpush1.msra.mxu0 0.0
    %1929 = vmatprep.subr.mxu0 0.0
    %1930 = vmatpush1.msra.mxu0 0.0
    %1931 = vmatprep.subr.mxu0 0.0
    %1932 = vmatpush1.msra.mxu0 0.0
    %1933 = vmatprep.subr.mxu0 0.0
    %1934 = vmatpush1.msra.mxu0 0.0
    %1935 = vmatprep.subr.mxu0 0.0
    %1936 = vmatpush1.msra.mxu0 0.0
    %1937 = vmatprep.subr.mxu0 0.0
    %1938 = vmatpush1.msra.mxu0 0.0
    %1939 = vmatprep.subr.mxu0 0.0
    %1940 = vmatpush1.msra.mxu0 0.0
    %1941 = vmatprep.mubr.f32.mxu0 0.0
    %1942 = vmatmul.mubr.f32.gmra.mrb[0].mxu0 %v1872
    %v1943 = vpop.f32.mrb[0].mxu0
    %v1944 = vadd.f32 %v1870, %v1943
    %v1945 = vpop.f32.mrb[0].mxu0
    %1946 = vmatprep.mubr.f32.mxu0 0.0
    %1947 = vmatmul.mubr.f32.gmra.mrb[0].mxu0 %v1875
    %v1948 = vpop.f32.mrb[0].mxu0
    %v1949 = vadd.f32 %v1870, %v1948
    %v1950 = vpop.f32.mrb[0].mxu0
    %1951 = vdwg.mxu0
    %v1952 = vadd.f32 %v1200, %v1944
    %v1953 = vadd.f32 %v1201, %v1949
    %v1954 = vsel %vm192, %v1952, 0.0
    %1955 = vadd.xlane.f32.xlu0 %v1954
    %v1956 = vpop.xlane.xlu0 %1955
    %v1957 = vsel %vm192, %v1953, 0.0
    %1958 = vadd.xlane.f32.xlu0 %v1957
    %v1959 = vpop.xlane.xlu0 %1958
    %v1960 = vmul.f32 %v1956, %v957
    %v1961 = vmul.f32 %v1959, %v957
    %v1962 = vsub.f32 %v1952, %v1960
    %v1963 = vsub.f32 %v1953, %v1961
    %v1964 = vmul.f32 %v1962, %v1962
    %v1965 = vmul.f32 %v1963, %v1963
    %v1966 = vsel %vm192, %v1964, 0.0
    %1967 = vadd.xlane.f32.xlu0 %v1966
    %v1968 = vpop.xlane.xlu0 %1967
    %v1969 = vsel %vm192, %v1965, 0.0
    %1970 = vadd.xlane.f32.xlu0 %v1969
    %v1971 = vpop.xlane.xlu0 %1970
    %v1972 = vmul.f32 %v1968, %v957
    %v1973 = vmul.f32 %v1971, %v957
    %v1974 = vadd.f32 %v1972, 1e-05
    %v1975 = vadd.f32 %v1973, 1e-05
    %v1976 = vrsqrt.pop %v1974
    %v1977 = vrsqrt.pop %v1975
    %v1978 = vmul.f32 %v1962, %v1976
    %v1979 = vmul.f32 %v1963, %v1977
    %v1980 = vlaneseq
    %v1981 = vshrl.u32 %v1980, 7
    %v1982 = vsub.s32 4, %v1981
    %v1983 = vrot.slane %v1223, %v1982
    %v1984 = vmul.f32 %v1978, %v1983
    %v1985 = vmul.f32 %v1979, %v1983
    %v1986 = vlaneseq
    %v1987 = vshrl.u32 %v1986, 7
    %v1988 = vsub.s32 5, %v1987
    %v1989 = vrot.slane %v1223, %v1988
    %v1990 = vadd.f32 %v1984, %v1989
    %v1991 = vadd.f32 %v1985, %v1989
    %v1992 = vlaneseq
    %v1993 = vshrl.u32 %v1992, 7
    %v1994 = vsub.s32 2, %v1993
    %v1995 = vrot.slane %v1223, %v1994
    %v1997 = vsel %vm192, %v1990, 0
    %v2000 = vsel %vm192, %v1991, 0
    %2002 = vmatprep.subr.mxu0 0.0
    %2003 = vmatpush1.msra.mxu0 %v1211
    %2004 = vmatprep.subr.mxu0 0.0
    %2005 = vmatpush1.msra.mxu0 %v1212
    %2006 = vmatprep.subr.mxu0 0.0
    %2007 = vmatpush1.msra.mxu0 %v1213
    %2008 = vmatprep.subr.mxu0 0.0
    %2009 = vmatpush1.msra.mxu0 %v1214
    %2010 = vmatprep.subr.mxu0 0.0
    %2011 = vmatpush1.msra.mxu0 0.0
    %2012 = vmatprep.subr.mxu0 0.0
    %2013 = vmatpush1.msra.mxu0 0.0
    %2014 = vmatprep.subr.mxu0 0.0
    %2015 = vmatpush1.msra.mxu0 0.0
    %2016 = vmatprep.subr.mxu0 0.0
    %2017 = vmatpush1.msra.mxu0 0.0
    %2018 = vmatprep.subr.mxu0 0.0
    %2019 = vmatpush1.msra.mxu0 0.0
    %2020 = vmatprep.subr.mxu0 0.0
    %2021 = vmatpush1.msra.mxu0 0.0
    %2022 = vmatprep.subr.mxu0 0.0
    %2023 = vmatpush1.msra.mxu0 0.0
    %2024 = vmatprep.subr.mxu0 0.0
    %2025 = vmatpush1.msra.mxu0 0.0
    %2026 = vmatprep.subr.mxu0 0.0
    %2027 = vmatpush1.msra.mxu0 0.0
    %2028 = vmatprep.subr.mxu0 0.0
    %2029 = vmatpush1.msra.mxu0 0.0
    %2030 = vmatprep.subr.mxu0 0.0
    %2031 = vmatpush1.msra.mxu0 0.0
    %2032 = vmatprep.subr.mxu0 0.0
    %2033 = vmatpush1.msra.mxu0 0.0
    %2034 = vmatprep.subr.mxu0 0.0
    %2035 = vmatpush1.msra.mxu0 0.0
    %2036 = vmatprep.subr.mxu0 0.0
    %2037 = vmatpush1.msra.mxu0 0.0
    %2038 = vmatprep.subr.mxu0 0.0
    %2039 = vmatpush1.msra.mxu0 0.0
    %2040 = vmatprep.subr.mxu0 0.0
    %2041 = vmatpush1.msra.mxu0 0.0
    %2042 = vmatprep.subr.mxu0 0.0
    %2043 = vmatpush1.msra.mxu0 0.0
    %2044 = vmatprep.subr.mxu0 0.0
    %2045 = vmatpush1.msra.mxu0 0.0
    %2046 = vmatprep.subr.mxu0 0.0
    %2047 = vmatpush1.msra.mxu0 0.0
    %2048 = vmatprep.subr.mxu0 0.0
    %2049 = vmatpush1.msra.mxu0 0.0
    %2050 = vmatprep.subr.mxu0 0.0
    %2051 = vmatpush1.msra.mxu0 0.0
    %2052 = vmatprep.subr.mxu0 0.0
    %2053 = vmatpush1.msra.mxu0 0.0
    %2054 = vmatprep.subr.mxu0 0.0
    %2055 = vmatpush1.msra.mxu0 0.0
    %2056 = vmatprep.subr.mxu0 0.0
    %2057 = vmatpush1.msra.mxu0 0.0
    %2058 = vmatprep.subr.mxu0 0.0
    %2059 = vmatpush1.msra.mxu0 0.0
    %2060 = vmatprep.subr.mxu0 0.0
    %2061 = vmatpush1.msra.mxu0 0.0
    %2062 = vmatprep.subr.mxu0 0.0
    %2063 = vmatpush1.msra.mxu0 0.0
    %2064 = vmatprep.subr.mxu0 0.0
    %2065 = vmatpush1.msra.mxu0 0.0
    %2066 = vmatprep.mubr.f32.mxu0 0.0
    %2067 = vmatmul.mubr.f32.gmra.mrb[0].mxu0 %v1997
    %v2068 = vpop.f32.mrb[0].mxu0
    %v2069 = vadd.f32 %v1995, %v2068
    %v2070 = vpop.f32.mrb[0].mxu0
    %2071 = vmatprep.mubr.f32.mxu0 0.0
    %2072 = vmatmul.mubr.f32.gmra.mrb[0].mxu0 %v2000
    %v2073 = vpop.f32.mrb[0].mxu0
    %v2074 = vadd.f32 %v1995, %v2073
    %v2075 = vpop.f32.mrb[0].mxu0
    %2076 = vdwg.mxu0
    %v2077 = vmax.f32 %v2069, 0.0
    %v2078 = vmax.f32 %v2074, 0.0
    %v2079 = vlaneseq
    %v2080 = vshrl.u32 %v2079, 7
    %v2081 = vsub.s32 3, %v2080
    %v2082 = vrot.slane %v1223, %v2081
    %v2084 = vsel %vm782, %v2077, 0
    %v2087 = vsel %vm782, %v2078, 0
    %2089 = vmatprep.subr.mxu0 0.0
    %2090 = vmatpush1.msra.mxu0 %v1215
    %2091 = vmatprep.subr.mxu0 0.0
    %2092 = vmatpush1.msra.mxu0 %v1216
    %2093 = vmatprep.subr.mxu0 0.0
    %2094 = vmatpush1.msra.mxu0 %v1217
    %2095 = vmatprep.subr.mxu0 0.0
    %2096 = vmatpush1.msra.mxu0 %v1218
    %2097 = vmatprep.subr.mxu0 0.0
    %2098 = vmatpush1.msra.mxu0 %v1219
    %2099 = vmatprep.subr.mxu0 0.0
    %2100 = vmatpush1.msra.mxu0 %v1220
    %2101 = vmatprep.subr.mxu0 0.0
    %2102 = vmatpush1.msra.mxu0 %v1221
    %2103 = vmatprep.subr.mxu0 0.0
    %2104 = vmatpush1.msra.mxu0 %v1222
    %2105 = vmatprep.subr.mxu0 0.0
    %2106 = vmatpush1.msra.mxu0 0.0
    %2107 = vmatprep.subr.mxu0 0.0
    %2108 = vmatpush1.msra.mxu0 0.0
    %2109 = vmatprep.subr.mxu0 0.0
    %2110 = vmatpush1.msra.mxu0 0.0
    %2111 = vmatprep.subr.mxu0 0.0
    %2112 = vmatpush1.msra.mxu0 0.0
    %2113 = vmatprep.subr.mxu0 0.0
    %2114 = vmatpush1.msra.mxu0 0.0
    %2115 = vmatprep.subr.mxu0 0.0
    %2116 = vmatpush1.msra.mxu0 0.0
    %2117 = vmatprep.subr.mxu0 0.0
    %2118 = vmatpush1.msra.mxu0 0.0
    %2119 = vmatprep.subr.mxu0 0.0
    %2120 = vmatpush1.msra.mxu0 0.0
    %2121 = vmatprep.subr.mxu0 0.0
    %2122 = vmatpush1.msra.mxu0 0.0
    %2123 = vmatprep.subr.mxu0 0.0
    %2124 = vmatpush1.msra.mxu0 0.0
    %2125 = vmatprep.subr.mxu0 0.0
    %2126 = vmatpush1.msra.mxu0 0.0
    %2127 = vmatprep.subr.mxu0 0.0
    %2128 = vmatpush1.msra.mxu0 0.0
    %2129 = vmatprep.subr.mxu0 0.0
    %2130 = vmatpush1.msra.mxu0 0.0
    %2131 = vmatprep.subr.mxu0 0.0
    %2132 = vmatpush1.msra.mxu0 0.0
    %2133 = vmatprep.subr.mxu0 0.0
    %2134 = vmatpush1.msra.mxu0 0.0
    %2135 = vmatprep.subr.mxu0 0.0
    %2136 = vmatpush1.msra.mxu0 0.0
    %2137 = vmatprep.subr.mxu0 0.0
    %2138 = vmatpush1.msra.mxu0 0.0
    %2139 = vmatprep.subr.mxu0 0.0
    %2140 = vmatpush1.msra.mxu0 0.0
    %2141 = vmatprep.subr.mxu0 0.0
    %2142 = vmatpush1.msra.mxu0 0.0
    %2143 = vmatprep.subr.mxu0 0.0
    %2144 = vmatpush1.msra.mxu0 0.0
    %2145 = vmatprep.subr.mxu0 0.0
    %2146 = vmatpush1.msra.mxu0 0.0
    %2147 = vmatprep.subr.mxu0 0.0
    %2148 = vmatpush1.msra.mxu0 0.0
    %2149 = vmatprep.subr.mxu0 0.0
    %2150 = vmatpush1.msra.mxu0 0.0
    %2151 = vmatprep.subr.mxu0 0.0
    %2152 = vmatpush1.msra.mxu0 0.0
    %2153 = vmatprep.mubr.f32.mxu0 0.0
    %2154 = vmatmul.mubr.f32.gmra.mrb[0].mxu0 %v2084
    %v2155 = vpop.f32.mrb[0].mxu0
    %v2156 = vadd.f32 %v2082, %v2155
    %v2157 = vpop.f32.mrb[0].mxu0
    %2158 = vmatprep.mubr.f32.mxu0 0.0
    %2159 = vmatmul.mubr.f32.gmra.mrb[0].mxu0 %v2087
    %v2160 = vpop.f32.mrb[0].mxu0
    %v2161 = vadd.f32 %v2082, %v2160
    %v2162 = vpop.f32.mrb[0].mxu0
    %2163 = vdwg.mxu0
    %v2164 = vadd.f32 %v1990, %v2156
    %v2165 = vadd.f32 %v1991, %v2161
    %v2166 = vsel %vm192, %v2164, 0.0
    %2167 = vadd.xlane.f32.xlu0 %v2166
    %v2168 = vpop.xlane.xlu0 %2167
    %v2169 = vsel %vm192, %v2165, 0.0
    %2170 = vadd.xlane.f32.xlu0 %v2169
    %v2171 = vpop.xlane.xlu0 %2170
    %v2172 = vmul.f32 %v2168, %v957
    %v2173 = vmul.f32 %v2171, %v957
    %v2174 = vsub.f32 %v2164, %v2172
    %v2175 = vsub.f32 %v2165, %v2173
    %v2176 = vmul.f32 %v2174, %v2174
    %v2177 = vmul.f32 %v2175, %v2175
    %v2178 = vsel %vm192, %v2176, 0.0
    %2179 = vadd.xlane.f32.xlu0 %v2178
    %v2180 = vpop.xlane.xlu0 %2179
    %v2181 = vsel %vm192, %v2177, 0.0
    %2182 = vadd.xlane.f32.xlu0 %v2181
    %v2183 = vpop.xlane.xlu0 %2182
    %v2184 = vmul.f32 %v2180, %v957
    %v2185 = vmul.f32 %v2183, %v957
    %v2186 = vadd.f32 %v2184, 1e-05
    %v2187 = vadd.f32 %v2185, 1e-05
    %v2188 = vrsqrt.pop %v2186
    %v2189 = vrsqrt.pop %v2187
    %v2190 = vmul.f32 %v2174, %v2188
    %v2191 = vmul.f32 %v2175, %v2189
    %v2192 = vlaneseq
    %v2193 = vshrl.u32 %v2192, 7
    %v2194 = vsub.s32 6, %v2193
    %v2195 = vrot.slane %v1223, %v2194
    %v2196 = vmul.f32 %v2190, %v2195
    %v2197 = vmul.f32 %v2191, %v2195
    %v2198 = vlaneseq
    %v2199 = vshrl.u32 %v2198, 7
    %v2200 = vsub.s32 7, %v2199
    %v2201 = vrot.slane %v1223, %v2200
    %v2202 = vadd.f32 %v2196, %v2201
    %v2203 = vadd.f32 %v2197, %v2201
    %v2204 = vld [vmem:[%s5] sm:$0xff]
    %v2205 = vld [vmem:[%s5 + $0x8] sm:$0xff]
    %v2206 = vld [vmem:[%s5 + $0x10] sm:$0xff]
    %v2207 = vld [vmem:[%s5 + $0x18] sm:$0xff]
    %v2208 = vld [vmem:[%s5 + $0x20] sm:$0x1]
    %v2209 = vlaneseq
    %v2210 = vshrl.u32 %v2209, 7
    %v2211 = vsub.s32 0, %v2210
    %v2212 = vrot.slane %v2208, %v2211
    %v2214 = vsel %vm192, %v2202, 0
    %v2217 = vsel %vm192, %v2203, 0
    %2219 = vmatprep.subr.mxu0 0.0
    %2220 = vmatpush1.msra.mxu0 %v2204
    %2221 = vmatprep.subr.mxu0 0.0
    %2222 = vmatpush1.msra.mxu0 %v2205
    %2223 = vmatprep.subr.mxu0 0.0
    %2224 = vmatpush1.msra.mxu0 %v2206
    %2225 = vmatprep.subr.mxu0 0.0
    %2226 = vmatpush1.msra.mxu0 %v2207
    %2227 = vmatprep.subr.mxu0 0.0
    %2228 = vmatpush1.msra.mxu0 0.0
    %2229 = vmatprep.subr.mxu0 0.0
    %2230 = vmatpush1.msra.mxu0 0.0
    %2231 = vmatprep.subr.mxu0 0.0
    %2232 = vmatpush1.msra.mxu0 0.0
    %2233 = vmatprep.subr.mxu0 0.0
    %2234 = vmatpush1.msra.mxu0 0.0
    %2235 = vmatprep.subr.mxu0 0.0
    %2236 = vmatpush1.msra.mxu0 0.0
    %2237 = vmatprep.subr.mxu0 0.0
    %2238 = vmatpush1.msra.mxu0 0.0
    %2239 = vmatprep.subr.mxu0 0.0
    %2240 = vmatpush1.msra.mxu0 0.0
    %2241 = vmatprep.subr.mxu0 0.0
    %2242 = vmatpush1.msra.mxu0 0.0
    %2243 = vmatprep.subr.mxu0 0.0
    %2244 = vmatpush1.msra.mxu0 0.0
    %2245 = vmatprep.subr.mxu0 0.0
    %2246 = vmatpush1.msra.mxu0 0.0
    %2247 = vmatprep.subr.mxu0 0.0
    %2248 = vmatpush1.msra.mxu0 0.0
    %2249 = vmatprep.subr.mxu0 0.0
    %2250 = vmatpush1.msra.mxu0 0.0
    %2251 = vmatprep.subr.mxu0 0.0
    %2252 = vmatpush1.msra.mxu0 0.0
    %2253 = vmatprep.subr.mxu0 0.0
    %2254 = vmatpush1.msra.mxu0 0.0
    %2255 = vmatprep.subr.mxu0 0.0
    %2256 = vmatpush1.msra.mxu0 0.0
    %2257 = vmatprep.subr.mxu0 0.0
    %2258 = vmatpush1.msra.mxu0 0.0
    %2259 = vmatprep.subr.mxu0 0.0
    %2260 = vmatpush1.msra.mxu0 0.0
    %2261 = vmatprep.subr.mxu0 0.0
    %2262 = vmatpush1.msra.mxu0 0.0
    %2263 = vmatprep.subr.mxu0 0.0
    %2264 = vmatpush1.msra.mxu0 0.0
    %2265 = vmatprep.subr.mxu0 0.0
    %2266 = vmatpush1.msra.mxu0 0.0
    %2267 = vmatprep.subr.mxu0 0.0
    %2268 = vmatpush1.msra.mxu0 0.0
    %2269 = vmatprep.subr.mxu0 0.0
    %2270 = vmatpush1.msra.mxu0 0.0
    %2271 = vmatprep.subr.mxu0 0.0
    %2272 = vmatpush1.msra.mxu0 0.0
    %2273 = vmatprep.subr.mxu0 0.0
    %2274 = vmatpush1.msra.mxu0 0.0
    %2275 = vmatprep.subr.mxu0 0.0
    %2276 = vmatpush1.msra.mxu0 0.0
    %2277 = vmatprep.subr.mxu0 0.0
    %2278 = vmatpush1.msra.mxu0 0.0
    %2279 = vmatprep.subr.mxu0 0.0
    %2280 = vmatpush1.msra.mxu0 0.0
    %2281 = vmatprep.subr.mxu0 0.0
    %2282 = vmatpush1.msra.mxu0 0.0
    %2283 = vmatprep.mubr.f32.mxu0 0.0
    %2284 = vmatmul.mubr.f32.gmra.mrb[0].mxu0 %v2214
    %v2285 = vpop.f32.mrb[0].mxu0
    %v2286 = vadd.f32 %v2212, %v2285
    %v2287 = vpop.f32.mrb[0].mxu0
    %2288 = vmatprep.mubr.f32.mxu0 0.0
    %2289 = vmatmul.mubr.f32.gmra.mrb[0].mxu0 %v2217
    %v2290 = vpop.f32.mrb[0].mxu0
    %v2291 = vadd.f32 %v2212, %v2290
    %v2292 = vpop.f32.mrb[0].mxu0
    %2293 = vdwg.mxu0
    %2294 = vst [vmem:[#allocation2] sm:$0xff] %v2286
    %2295 = vst [vmem:[#allocation2 + $0x8] sm:$0xff] %v2291
    // Predicated region
    $region26: #{transformer_lm_forward.1} parent=1 // pred_check
      _
    $region27: #{transformer_lm_forward.1} parent=1 // pred_check_branch
      %2297 = sbr.rel (0) target = $region29
    $region28: #{transformer_lm_forward.1} parent=1 // pred_region
      %s2299 = ssub.s32 256, 256
      %2300 = vsyncadd [#allocation3], %s2299
      %s2301 = sshll.u32 [#allocation2], 4
      %s2302 = int_to_ptr.vmem [resolvable:$true] %s2301
      %2307 = dma.vmem_to_hbm [thread:$0]  %s2302, 256, %s6, [#allocation3], 128, 128, 8
    $region29: #{transformer_lm_forward.1} parent=1 // pred_fallthru
      _
    // Predicated region
    $region30: #{transformer_lm_forward.1} parent=1 // pred_check
      _
    $region31: #{transformer_lm_forward.1} parent=1 // pred_check_branch
      %2309 = sbr.rel (0) target = $region33
    $region32: #{transformer_lm_forward.1} parent=1 // pred_region
      %2310 = dma.done [#allocation3], 256
    $region33: #{transformer_lm_forward.1} parent=1 // pred_fallthru
      _
    %2311 = vsyncpa [#allocation3], 1

</llo_original>
